<compile_context>
chip_gen: v7x
topology: tpu7x:2x2x1
jax: 0.10.0
libtpu: 0.0.40
codegen_flags: <defaults>
</compile_context>

<pallas_src>
import jax
import jax.numpy as jnp
from jax import lax
from jax.experimental import pallas as pl
from jax.experimental.pallas import tpu as pltpu

EPS = 1e-5  # nn.BatchNorm2d default eps


# ----------------------------------------------------------------------------
# Fully fused Bottleneck kernel:
#   conv1(1x1)+bn1+relu -> conv2(3x3,pad1[,stride])+bn2+relu -> conv3(1x1)+bn3
# Activations live as (C, M) with M = N*H*W in the lane dimension.
# ----------------------------------------------------------------------------
def _make_bottleneck_kernel(N, H, W, stride, P, cdtype):
    M = N * H * W
    strided = stride != 1
    Ho, Wo = (H - 1) // stride + 1, (W - 1) // stride + 1
    hw_pow2 = (W & (W - 1)) == 0 and (H & (H - 1)) == 0

    def kernel(x_ref, w1_ref, w2_ref, w3_ref,
               g1_ref, b1_ref, g2_ref, b2_ref, g3_ref, b3_ref,
               o_ref, stk_ref):
        # lane position -> (h, w) image coordinates, generated in-kernel
        idx = lax.broadcasted_iota(jnp.int32, (1, M), 1)
        if hw_pow2:
            ww = idx & (W - 1)
            hh = (idx >> (W.bit_length() - 1)) & (H - 1)
        else:
            ww = idx % W
            hh = (idx // W) % H

        def bn(y, g_ref, b_ref, relu, sel, inv_cnt):
            # single data pass for stats: sum & sum-of-squares together
            # (biased var = E[x^2] - mean^2), gamma folded into the scale.
            ys = y if sel is None else y * sel
            s = jnp.sum(ys, axis=1, keepdims=True)
            ss = jnp.sum(ys * ys, axis=1, keepdims=True)
            mean = s * inv_cnt
            var = jnp.maximum(ss * inv_cnt - mean * mean, 0.0)
            scale = g_ref[...] * lax.rsqrt(var + EPS)          # EUP slot
            shift = b_ref[...] - mean * scale
            out = y * scale + shift                            # 1 mul + 1 add / elem
            return jnp.maximum(out, 0.0) if relu else out

        # ---- conv1 (1x1) + bn1 + relu : (P,Cin) @ (Cin,M) -> (P,M) ----------
        y = jnp.dot(w1_ref[...], x_ref[...], preferred_element_type=jnp.float32)
        y = bn(y, g1_ref, b1_ref, relu=True, sel=None, inv_cnt=1.0 / M)

        # ---- conv2 (3x3, pad=1): stage 9 shifted + masked taps into a -------
        # (9P, M) VMEM scratch along the contraction axis, then ONE K = 9P
        # MXU matmul (instead of 9 K=P pushes + 8 accumulator adds).
        k = 0
        for kh in range(3):
            for kw in range(3):
                dh, dw = kh - 1, kw - 1
                delta = dh * W + dw
                if delta == 0:
                    tap = y                                    # center tap: mask == 1
                else:
                    # shifted[m] = y[m + delta]; wrapped / out-of-image lanes are
                    # zeroed by the iota-derived boundary mask for this tap.
                    ok = ((hh + dh >= 0) & (hh + dh < H) &
                          (ww + dw >= 0) & (ww + dw < W)).astype(jnp.float32)
                    tap = pltpu.roll(y, shift=(-delta) % M, axis=1) * ok
                stk_ref[k * P:(k + 1) * P, :] = tap            # (8,128)-aligned store
                k += 1
        acc = jnp.dot(w2_ref[...], stk_ref[...].astype(cdtype),
                      preferred_element_type=jnp.float32)      # (P, M)

        # stride>1: bn2/bn3 statistics cover only the strided output lattice;
        # non-selected lanes ride along (1x1 convs are pointwise, so they never
        # contaminate selected lanes) and are dropped by a cheap strided slice
        # in the wrapper -- no O(M*Mo) one-hot subsample matmul.
        if strided:
            if stride & (stride - 1) == 0:
                sel = ((hh & (stride - 1)) == 0) & ((ww & (stride - 1)) == 0)
            else:
                sel = (hh % stride == 0) & (ww % stride == 0)
            sel = sel.astype(jnp.float32)
            inv_cnt2 = 1.0 / (N * Ho * Wo)
        else:
            sel, inv_cnt2 = None, 1.0 / M
        y = bn(acc, g2_ref, b2_ref, relu=True, sel=sel, inv_cnt=inv_cnt2)

        # ---- conv3 (1x1) + bn3 (no relu; residual is never added here) ------
        y = jnp.dot(w3_ref[...], y.astype(cdtype), preferred_element_type=jnp.float32)
        y = bn(y, g3_ref, b3_ref, relu=False, sel=sel, inv_cnt=inv_cnt2)

        o_ref[...] = y.astype(o_ref.dtype)

    return kernel


# ----------------------------------------------------------------------------
# One-time parameter prep (hoisted out of the per-forward path).
# Default compute dtype is bf16 on all TPU generations (MXUs are bf16-native);
# BN params always stay float32.
# ----------------------------------------------------------------------------
def prepare_params(params, compute_dtype=jnp.bfloat16):
    P = params["w1"].shape[0]
    col = lambda v: jnp.asarray(v, jnp.float32).reshape(-1, 1)
    w2 = jnp.asarray(params["w2"], jnp.float32)                       # (P, P, 3, 3)
    # pack to (P_out, 9*P_in), column block k = kh*3 + kw  ->  w2[:, :, kh, kw]
    w2_packed = jnp.transpose(w2, (0, 2, 3, 1)).reshape(P, 9 * P)
    return {
        "w1": jnp.asarray(params["w1"][:, :, 0, 0], compute_dtype),   # (P, Cin)
        "w2": w2_packed.astype(compute_dtype),                        # (P, 9P)
        "w3": jnp.asarray(params["w3"][:, :, 0, 0], compute_dtype),   # (4P, P)
        "g1": col(params["g1"]), "b1": col(params["b1"]),
        "g2": col(params["g2"]), "b2": col(params["b2"]),
        "g3": col(params["g3"]), "b3": col(params["b3"]),
    }


# ----------------------------------------------------------------------------
# Channel-major, lane-dense entry point: x_cm is (Cin, N*H*W).  Returns
# (4*planes, N*Ho*Wo) so consecutive bottleneck blocks can chain in the (C, M)
# layout without NCHW transposes in between.
# ----------------------------------------------------------------------------
def bottleneck_forward_cm(x_cm, prep, N, H, W, stride=1, out_dtype=None):
    P = prep["w1"].shape[0]
    cdtype = prep["w1"].dtype
    M = N * H * W
    if out_dtype is None:
        out_dtype = cdtype
    vmem = pl.BlockSpec(memory_space=pltpu.MemorySpace.VMEM)
    args = (x_cm.astype(cdtype), prep["w1"], prep["w2"], prep["w3"],
            prep["g1"], prep["b1"], prep["g2"], prep["b2"],
            prep["g3"], prep["b3"])
    # TODO(synk): for post-CIFAR shapes (esp. v7x's 64 MiB VMEM) tile the M axis
    # with a grid + two-pass BN (cross-tile sum/sumsq scratch, then a normalize
    # sweep) and mark the M axis "parallel" so work shards across v7x's two
    # TensorCores; at CIFAR sizes everything is comfortably VMEM-resident and a
    # grid-less call avoids the multi-pass BN restructuring.
    out2d = pl.pallas_call(
        _make_bottleneck_kernel(N, H, W, stride, P, cdtype),
        out_shape=jax.ShapeDtypeStruct((4 * P, M), out_dtype),
        in_specs=[vmem] * len(args),
        out_specs=vmem,
        scratch_shapes=[pltpu.VMEM((9 * P, M), jnp.float32)],
    )(*args)
    if stride != 1:
        Ho, Wo = (H - 1) // stride + 1, (W - 1) // stride + 1
        out2d = (out2d.reshape(4 * P, N, H, W)[:, :, ::stride, ::stride]
                 .reshape(4 * P, N * Ho * Wo))
    return out2d


# ----------------------------------------------------------------------------
# Bottleneck forward (NCHW in / NCHW out, matching PyTorch).
# ----------------------------------------------------------------------------
def bottleneck_forward(x_nchw, prep, stride=1, out_dtype=None):
    N, Cin, H, W = x_nchw.shape
    P = prep["w1"].shape[0]
    Ho, Wo = (H - 1) // stride + 1, (W - 1) // stride + 1
    x_cm = jnp.transpose(x_nchw, (1, 0, 2, 3)).reshape(Cin, N * H * W)
    out_cm = bottleneck_forward_cm(x_cm, prep, N, H, W, stride, out_dtype)
    return jnp.transpose(out_cm.reshape(4 * P, N, Ho, Wo), (1, 0, 2, 3))


# ----------------------------------------------------------------------------
# Pure-JAX reference (lax.conv) for correctness checking.
# ----------------------------------------------------------------------------
def reference_forward(x_nchw, params, stride=1):
    x = jnp.transpose(x_nchw, (0, 2, 3, 1))

    def bn(y, g, b):
        mean = jnp.mean(y, axis=(0, 1, 2), keepdims=True)
        var = jnp.mean(jnp.square(y - mean), axis=(0, 1, 2), keepdims=True)
        return (y - mean) * lax.rsqrt(var + EPS) * g + b

    def conv(y, w_oihw, s, pad):
        w_hwio = jnp.transpose(w_oihw, (2, 3, 1, 0))
        return lax.conv_general_dilated(
            y, w_hwio, (s, s), [(pad, pad), (pad, pad)],
            dimension_numbers=("NHWC", "HWIO", "NHWC"))

    y = jnp.maximum(bn(conv(x, params["w1"], 1, 0), params["g1"], params["b1"]), 0.0)
    y = jnp.maximum(bn(conv(y, params["w2"], stride, 1), params["g2"], params["b2"]), 0.0)
    y = bn(conv(y, params["w3"], 1, 0), params["g3"], params["b3"])
    return jnp.transpose(y, (0, 3, 1, 2))


if __name__ == "__main__":
    # Small, deterministic configuration (inplanes=16, planes=8 -> out=32 ch).
    N, inplanes, H, W = 2, 16, 16, 16
    planes = 8

    key = jax.random.PRNGKey(0)
    ks = jax.random.split(key, 8)
    params = {
        "w1": 0.1 * jax.random.normal(ks[0], (planes, inplanes, 1, 1), jnp.float32),
        "g1": 1.0 + 0.1 * jax.random.normal(ks[1], (planes,), jnp.float32),
        "b1": 0.1 * jax.random.normal(ks[2], (planes,), jnp.float32),
        "w2": 0.1 * jax.random.normal(ks[3], (planes, planes, 3, 3), jnp.float32),
        "g2": 1.0 + 0.1 * jax.random.normal(ks[4], (planes,), jnp.float32),
        "b2": 0.1 * jax.random.normal(ks[5], (planes,), jnp.float32),
        "w3": 0.1 * jax.random.normal(ks[6], (planes * 4, planes, 1, 1), jnp.float32),
        "g3": 1.0 + 0.1 * jax.random.normal(ks[7], (planes * 4,), jnp.float32),
        "b3": jnp.zeros((planes * 4,), jnp.float32),
    }
    x = jax.random.normal(jax.random.PRNGKey(42), (N, inplanes, H, W), jnp.float32)

    # ---- stride=1, f32 compute (strict check) --------------------------------
    prep_f32 = prepare_params(params, jnp.float32)
    fwd1 = jax.jit(lambda a: bottleneck_forward(a, prep_f32, stride=1))
    out1 = jax.block_until_ready(fwd1(x))
    ref1 = jax.block_until_ready(reference_forward(x, params, stride=1))
    assert out1.shape == (N, planes * 4, H, W), out1.shape
    assert jnp.allclose(out1, ref1, rtol=2e-3, atol=2e-3), float(jnp.max(jnp.abs(out1 - ref1)))

    # ---- stride=2, f32 compute ------------------------------------------------
    fwd2 = jax.jit(lambda a: bottleneck_forward(a, prep_f32, stride=2))
    out2 = jax.block_until_ready(fwd2(x))
    ref2 = jax.block_until_ready(reference_forward(x, params, stride=2))
    assert out2.shape == (N, planes * 4, H // 2, W // 2), out2.shape
    assert jnp.allclose(out2, ref2, rtol=2e-3, atol=2e-3), float(jnp.max(jnp.abs(out2 - ref2)))

    # ---- stride=1 and 2, default bf16 MXU operands + bf16 output --------------
    prep_bf16 = prepare_params(params)          # default compute dtype: bfloat16
    fwd_bf1 = jax.jit(lambda a: bottleneck_forward(a, prep_bf16, stride=1))
    out_bf1 = jax.block_until_ready(fwd_bf1(x)).astype(jnp.float32)
    assert jnp.allclose(out_bf1, ref1, rtol=1e-1, atol=1e-1), float(jnp.max(jnp.abs(out_bf1 - ref1)))

    fwd_bf2 = jax.jit(lambda a: bottleneck_forward(a, prep_bf16, stride=2))
    out_bf2 = jax.block_until_ready(fwd_bf2(x)).astype(jnp.float32)
    assert jnp.allclose(out_bf2, ref2, rtol=1e-1, atol=1e-1), float(jnp.max(jnp.abs(out_bf2 - ref2)))

    print("KERNEL_OK")
</pallas_src>

<mosaic_0001>
module attributes {stable_mosaic.version = 11 : i64} {
  func.func @kernel(%arg0: memref<16x512xf32, #tpu.memory_space<vmem>>, %arg1: memref<8x16xf32, #tpu.memory_space<vmem>>, %arg2: memref<8x72xf32, #tpu.memory_space<vmem>>, %arg3: memref<32x8xf32, #tpu.memory_space<vmem>>, %arg4: memref<8x1xf32, #tpu.memory_space<vmem>>, %arg5: memref<8x1xf32, #tpu.memory_space<vmem>>, %arg6: memref<8x1xf32, #tpu.memory_space<vmem>>, %arg7: memref<8x1xf32, #tpu.memory_space<vmem>>, %arg8: memref<32x1xf32, #tpu.memory_space<vmem>>, %arg9: memref<32x1xf32, #tpu.memory_space<vmem>>, %arg10: memref<32x512xf32, #tpu.memory_space<vmem>>, %arg11: memref<72x512xf32, #tpu.memory_space<vmem>>) attributes {dimension_semantics = [], scalar_prefetch = 0 : i64, scratch_operands = 1 : i64, tpu.core_type = #tpu.core_type<tc>} {
    %0 = tpu.iota {dimensions = array<i32: 1>} : vector<1x512xi32>
    %c15_i32 = arith.constant 15 : i32
    %1 = vector.broadcast %c15_i32 : i32 to vector<1x512xi32>
    %2 = arith.andi %0, %1 : vector<1x512xi32>
    %c4_i32 = arith.constant 4 : i32
    %3 = vector.broadcast %c4_i32 : i32 to vector<1x512xi32>
    %4 = arith.shrsi %0, %3 : vector<1x512xi32>
    %c15_i32_0 = arith.constant 15 : i32
    %5 = vector.broadcast %c15_i32_0 : i32 to vector<1x512xi32>
    %6 = arith.andi %4, %5 : vector<1x512xi32>
    %c0 = arith.constant 0 : index
    %c0_1 = arith.constant 0 : index
    %7 = vector.load %arg1[%c0, %c0_1] : memref<8x16xf32, #tpu.memory_space<vmem>>, vector<8x16xf32>
    %c0_2 = arith.constant 0 : index
    %c0_3 = arith.constant 0 : index
    %8 = vector.load %arg0[%c0_2, %c0_3] : memref<16x512xf32, #tpu.memory_space<vmem>>, vector<16x512xf32>
    %cst = arith.constant dense<0.000000e+00> : vector<8x512xf32>
    %9 = tpu.matmul %7, %8, %cst {dimension_numbers = #tpu.dot_dimension_numbers<[1], [0], [0], [1], [0, 0, 1, 1], [], []>} : vector<8x16xf32>, vector<16x512xf32>, vector<8x512xf32> -> vector<8x512xf32>
    %cst_4 = arith.constant dense<0.000000e+00> : vector<8xf32>
    %10 = vector.multi_reduction <add>, %9, %cst_4 [1] : vector<8x512xf32> to vector<8xf32>
    %11 = vector.shape_cast %10 : vector<8xf32> to vector<8x1xf32>
    %12 = arith.mulf %9, %9 : vector<8x512xf32>
    %cst_5 = arith.constant dense<0.000000e+00> : vector<8xf32>
    %13 = vector.multi_reduction <add>, %12, %cst_5 [1] : vector<8x512xf32> to vector<8xf32>
    %14 = vector.shape_cast %13 : vector<8xf32> to vector<8x1xf32>
    %cst_6 = arith.constant 0.001953125 : f32
    %15 = vector.broadcast %cst_6 : f32 to vector<8x1xf32>
    %16 = arith.mulf %11, %15 : vector<8x1xf32>
    %cst_7 = arith.constant 0.001953125 : f32
    %17 = vector.broadcast %cst_7 : f32 to vector<8x1xf32>
    %18 = arith.mulf %14, %17 : vector<8x1xf32>
    %19 = arith.mulf %16, %16 : vector<8x1xf32>
    %20 = arith.subf %18, %19 : vector<8x1xf32>
    %cst_8 = arith.constant 0.000000e+00 : f32
    %21 = vector.broadcast %cst_8 : f32 to vector<8x1xf32>
    %22 = arith.maximumf %20, %21 : vector<8x1xf32>
    %c0_9 = arith.constant 0 : index
    %c0_10 = arith.constant 0 : index
    %23 = vector.load %arg4[%c0_9, %c0_10] : memref<8x1xf32, #tpu.memory_space<vmem>>, vector<8x1xf32>
    %cst_11 = arith.constant 9.99999974E-6 : f32
    %24 = vector.broadcast %cst_11 : f32 to vector<8x1xf32>
    %25 = arith.addf %22, %24 : vector<8x1xf32>
    %26 = math.rsqrt %25 : vector<8x1xf32>
    %27 = arith.mulf %23, %26 : vector<8x1xf32>
    %c0_12 = arith.constant 0 : index
    %c0_13 = arith.constant 0 : index
    %28 = vector.load %arg5[%c0_12, %c0_13] : memref<8x1xf32, #tpu.memory_space<vmem>>, vector<8x1xf32>
    %29 = arith.mulf %16, %27 : vector<8x1xf32>
    %30 = arith.subf %28, %29 : vector<8x1xf32>
    %31 = vector.broadcast %27 : vector<8x1xf32> to vector<8x512xf32>
    %32 = arith.mulf %9, %31 : vector<8x512xf32>
    %33 = vector.broadcast %30 : vector<8x1xf32> to vector<8x512xf32>
    %34 = arith.addf %32, %33 : vector<8x512xf32>
    %cst_14 = arith.constant 0.000000e+00 : f32
    %35 = vector.broadcast %cst_14 : f32 to vector<8x512xf32>
    %36 = arith.maximumf %34, %35 : vector<8x512xf32>
    %c-1_i32 = arith.constant -1 : i32
    %37 = vector.broadcast %c-1_i32 : i32 to vector<1x512xi32>
    %38 = arith.addi %6, %37 : vector<1x512xi32>
    %c0_i32 = arith.constant 0 : i32
    %39 = vector.broadcast %c0_i32 : i32 to vector<1x512xi32>
    %40 = arith.cmpi sge, %38, %39 : vector<1x512xi32>
    %c-1_i32_15 = arith.constant -1 : i32
    %41 = vector.broadcast %c-1_i32_15 : i32 to vector<1x512xi32>
    %42 = arith.addi %6, %41 : vector<1x512xi32>
    %c16_i32 = arith.constant 16 : i32
    %43 = vector.broadcast %c16_i32 : i32 to vector<1x512xi32>
    %44 = arith.cmpi slt, %42, %43 : vector<1x512xi32>
    %45 = arith.andi %40, %44 : vector<1x512xi1>
    %c-1_i32_16 = arith.constant -1 : i32
    %46 = vector.broadcast %c-1_i32_16 : i32 to vector<1x512xi32>
    %47 = arith.addi %2, %46 : vector<1x512xi32>
    %c0_i32_17 = arith.constant 0 : i32
    %48 = vector.broadcast %c0_i32_17 : i32 to vector<1x512xi32>
    %49 = arith.cmpi sge, %47, %48 : vector<1x512xi32>
    %50 = arith.andi %45, %49 : vector<1x512xi1>
    %c-1_i32_18 = arith.constant -1 : i32
    %51 = vector.broadcast %c-1_i32_18 : i32 to vector<1x512xi32>
    %52 = arith.addi %2, %51 : vector<1x512xi32>
    %c16_i32_19 = arith.constant 16 : i32
    %53 = vector.broadcast %c16_i32_19 : i32 to vector<1x512xi32>
    %54 = arith.cmpi slt, %52, %53 : vector<1x512xi32>
    %55 = arith.andi %50, %54 : vector<1x512xi1>
    %56 = arith.extui %55 : vector<1x512xi1> to vector<1x512xi32>
    %57 = arith.sitofp %56 : vector<1x512xi32> to vector<1x512xf32>
    %c17_i32 = arith.constant 17 : i32
    %58 = tpu.dynamic_rotate %36 by %c17_i32 dim 1 : vector<8x512xf32>, i32 -> vector<8x512xf32>
    %59 = vector.broadcast %57 : vector<1x512xf32> to vector<8x512xf32>
    %60 = arith.mulf %58, %59 : vector<8x512xf32>
    %c0_20 = arith.constant 0 : index
    %c0_21 = arith.constant 0 : index
    %61 = vector.load %arg11[%c0_20, %c0_21] : memref<72x512xf32, #tpu.memory_space<vmem>>, vector<8x512xf32>
    tpu.vector_store %arg11[%c0_20, %c0_21], %60 {strides = array<i32>} : memref<72x512xf32, #tpu.memory_space<vmem>>, vector<8x512xf32>,
    %c-1_i32_22 = arith.constant -1 : i32
    %62 = vector.broadcast %c-1_i32_22 : i32 to vector<1x512xi32>
    %63 = arith.addi %6, %62 : vector<1x512xi32>
    %c0_i32_23 = arith.constant 0 : i32
    %64 = vector.broadcast %c0_i32_23 : i32 to vector<1x512xi32>
    %65 = arith.cmpi sge, %63, %64 : vector<1x512xi32>
    %c-1_i32_24 = arith.constant -1 : i32
    %66 = vector.broadcast %c-1_i32_24 : i32 to vector<1x512xi32>
    %67 = arith.addi %6, %66 : vector<1x512xi32>
    %c16_i32_25 = arith.constant 16 : i32
    %68 = vector.broadcast %c16_i32_25 : i32 to vector<1x512xi32>
    %69 = arith.cmpi slt, %67, %68 : vector<1x512xi32>
    %70 = arith.andi %65, %69 : vector<1x512xi1>
    %c0_i32_26 = arith.constant 0 : i32
    %71 = vector.broadcast %c0_i32_26 : i32 to vector<1x512xi32>
    %72 = arith.addi %2, %71 : vector<1x512xi32>
    %c0_i32_27 = arith.constant 0 : i32
    %73 = vector.broadcast %c0_i32_27 : i32 to vector<1x512xi32>
    %74 = arith.cmpi sge, %72, %73 : vector<1x512xi32>
    %75 = arith.andi %70, %74 : vector<1x512xi1>
    %c0_i32_28 = arith.constant 0 : i32
    %76 = vector.broadcast %c0_i32_28 : i32 to vector<1x512xi32>
    %77 = arith.addi %2, %76 : vector<1x512xi32>
    %c16_i32_29 = arith.constant 16 : i32
    %78 = vector.broadcast %c16_i32_29 : i32 to vector<1x512xi32>
    %79 = arith.cmpi slt, %77, %78 : vector<1x512xi32>
    %80 = arith.andi %75, %79 : vector<1x512xi1>
    %81 = arith.extui %80 : vector<1x512xi1> to vector<1x512xi32>
    %82 = arith.sitofp %81 : vector<1x512xi32> to vector<1x512xf32>
    %c16_i32_30 = arith.constant 16 : i32
    %83 = tpu.dynamic_rotate %36 by %c16_i32_30 dim 1 : vector<8x512xf32>, i32 -> vector<8x512xf32>
    %84 = vector.broadcast %82 : vector<1x512xf32> to vector<8x512xf32>
    %85 = arith.mulf %83, %84 : vector<8x512xf32>
    %c8 = arith.constant 8 : index
    %c0_31 = arith.constant 0 : index
    %86 = vector.load %arg11[%c8, %c0_31] : memref<72x512xf32, #tpu.memory_space<vmem>>, vector<8x512xf32>
    tpu.vector_store %arg11[%c8, %c0_31], %85 {strides = array<i32>} : memref<72x512xf32, #tpu.memory_space<vmem>>, vector<8x512xf32>,
    %c-1_i32_32 = arith.constant -1 : i32
    %87 = vector.broadcast %c-1_i32_32 : i32 to vector<1x512xi32>
    %88 = arith.addi %6, %87 : vector<1x512xi32>
    %c0_i32_33 = arith.constant 0 : i32
    %89 = vector.broadcast %c0_i32_33 : i32 to vector<1x512xi32>
    %90 = arith.cmpi sge, %88, %89 : vector<1x512xi32>
    %c-1_i32_34 = arith.constant -1 : i32
    %91 = vector.broadcast %c-1_i32_34 : i32 to vector<1x512xi32>
    %92 = arith.addi %6, %91 : vector<1x512xi32>
    %c16_i32_35 = arith.constant 16 : i32
    %93 = vector.broadcast %c16_i32_35 : i32 to vector<1x512xi32>
    %94 = arith.cmpi slt, %92, %93 : vector<1x512xi32>
    %95 = arith.andi %90, %94 : vector<1x512xi1>
    %c1_i32 = arith.constant 1 : i32
    %96 = vector.broadcast %c1_i32 : i32 to vector<1x512xi32>
    %97 = arith.addi %2, %96 : vector<1x512xi32>
    %c0_i32_36 = arith.constant 0 : i32
    %98 = vector.broadcast %c0_i32_36 : i32 to vector<1x512xi32>
    %99 = arith.cmpi sge, %97, %98 : vector<1x512xi32>
    %100 = arith.andi %95, %99 : vector<1x512xi1>
    %c1_i32_37 = arith.constant 1 : i32
    %101 = vector.broadcast %c1_i32_37 : i32 to vector<1x512xi32>
    %102 = arith.addi %2, %101 : vector<1x512xi32>
    %c16_i32_38 = arith.constant 16 : i32
    %103 = vector.broadcast %c16_i32_38 : i32 to vector<1x512xi32>
    %104 = arith.cmpi slt, %102, %103 : vector<1x512xi32>
    %105 = arith.andi %100, %104 : vector<1x512xi1>
    %106 = arith.extui %105 : vector<1x512xi1> to vector<1x512xi32>
    %107 = arith.sitofp %106 : vector<1x512xi32> to vector<1x512xf32>
    %c15_i32_39 = arith.constant 15 : i32
    %108 = tpu.dynamic_rotate %36 by %c15_i32_39 dim 1 : vector<8x512xf32>, i32 -> vector<8x512xf32>
    %109 = vector.broadcast %107 : vector<1x512xf32> to vector<8x512xf32>
    %110 = arith.mulf %108, %109 : vector<8x512xf32>
    %c16 = arith.constant 16 : index
    %c0_40 = arith.constant 0 : index
    %111 = vector.load %arg11[%c16, %c0_40] : memref<72x512xf32, #tpu.memory_space<vmem>>, vector<8x512xf32>
    tpu.vector_store %arg11[%c16, %c0_40], %110 {strides = array<i32>} : memref<72x512xf32, #tpu.memory_space<vmem>>, vector<8x512xf32>,
    %c0_i32_41 = arith.constant 0 : i32
    %112 = vector.broadcast %c0_i32_41 : i32 to vector<1x512xi32>
    %113 = arith.addi %6, %112 : vector<1x512xi32>
    %c0_i32_42 = arith.constant 0 : i32
    %114 = vector.broadcast %c0_i32_42 : i32 to vector<1x512xi32>
    %115 = arith.cmpi sge, %113, %114 : vector<1x512xi32>
    %c0_i32_43 = arith.constant 0 : i32
    %116 = vector.broadcast %c0_i32_43 : i32 to vector<1x512xi32>
    %117 = arith.addi %6, %116 : vector<1x512xi32>
    %c16_i32_44 = arith.constant 16 : i32
    %118 = vector.broadcast %c16_i32_44 : i32 to vector<1x512xi32>
    %119 = arith.cmpi slt, %117, %118 : vector<1x512xi32>
    %120 = arith.andi %115, %119 : vector<1x512xi1>
    %c-1_i32_45 = arith.constant -1 : i32
    %121 = vector.broadcast %c-1_i32_45 : i32 to vector<1x512xi32>
    %122 = arith.addi %2, %121 : vector<1x512xi32>
    %c0_i32_46 = arith.constant 0 : i32
    %123 = vector.broadcast %c0_i32_46 : i32 to vector<1x512xi32>
    %124 = arith.cmpi sge, %122, %123 : vector<1x512xi32>
    %125 = arith.andi %120, %124 : vector<1x512xi1>
    %c-1_i32_47 = arith.constant -1 : i32
    %126 = vector.broadcast %c-1_i32_47 : i32 to vector<1x512xi32>
    %127 = arith.addi %2, %126 : vector<1x512xi32>
    %c16_i32_48 = arith.constant 16 : i32
    %128 = vector.broadcast %c16_i32_48 : i32 to vector<1x512xi32>
    %129 = arith.cmpi slt, %127, %128 : vector<1x512xi32>
    %130 = arith.andi %125, %129 : vector<1x512xi1>
    %131 = arith.extui %130 : vector<1x512xi1> to vector<1x512xi32>
    %132 = arith.sitofp %131 : vector<1x512xi32> to vector<1x512xf32>
    %c1_i32_49 = arith.constant 1 : i32
    %133 = tpu.dynamic_rotate %36 by %c1_i32_49 dim 1 : vector<8x512xf32>, i32 -> vector<8x512xf32>
    %134 = vector.broadcast %132 : vector<1x512xf32> to vector<8x512xf32>
    %135 = arith.mulf %133, %134 : vector<8x512xf32>
    %c24 = arith.constant 24 : index
    %c0_50 = arith.constant 0 : index
    %136 = vector.load %arg11[%c24, %c0_50] : memref<72x512xf32, #tpu.memory_space<vmem>>, vector<8x512xf32>
    tpu.vector_store %arg11[%c24, %c0_50], %135 {strides = array<i32>} : memref<72x512xf32, #tpu.memory_space<vmem>>, vector<8x512xf32>,
    %c32 = arith.constant 32 : index
    %c0_51 = arith.constant 0 : index
    %137 = vector.load %arg11[%c32, %c0_51] : memref<72x512xf32, #tpu.memory_space<vmem>>, vector<8x512xf32>
    tpu.vector_store %arg11[%c32, %c0_51], %36 {strides = array<i32>} : memref<72x512xf32, #tpu.memory_space<vmem>>, vector<8x512xf32>,
    %c0_i32_52 = arith.constant 0 : i32
    %138 = vector.broadcast %c0_i32_52 : i32 to vector<1x512xi32>
    %139 = arith.addi %6, %138 : vector<1x512xi32>
    %c0_i32_53 = arith.constant 0 : i32
    %140 = vector.broadcast %c0_i32_53 : i32 to vector<1x512xi32>
    %141 = arith.cmpi sge, %139, %140 : vector<1x512xi32>
    %c0_i32_54 = arith.constant 0 : i32
    %142 = vector.broadcast %c0_i32_54 : i32 to vector<1x512xi32>
    %143 = arith.addi %6, %142 : vector<1x512xi32>
    %c16_i32_55 = arith.constant 16 : i32
    %144 = vector.broadcast %c16_i32_55 : i32 to vector<1x512xi32>
    %145 = arith.cmpi slt, %143, %144 : vector<1x512xi32>
    %146 = arith.andi %141, %145 : vector<1x512xi1>
    %c1_i32_56 = arith.constant 1 : i32
    %147 = vector.broadcast %c1_i32_56 : i32 to vector<1x512xi32>
    %148 = arith.addi %2, %147 : vector<1x512xi32>
    %c0_i32_57 = arith.constant 0 : i32
    %149 = vector.broadcast %c0_i32_57 : i32 to vector<1x512xi32>
    %150 = arith.cmpi sge, %148, %149 : vector<1x512xi32>
    %151 = arith.andi %146, %150 : vector<1x512xi1>
    %c1_i32_58 = arith.constant 1 : i32
    %152 = vector.broadcast %c1_i32_58 : i32 to vector<1x512xi32>
    %153 = arith.addi %2, %152 : vector<1x512xi32>
    %c16_i32_59 = arith.constant 16 : i32
    %154 = vector.broadcast %c16_i32_59 : i32 to vector<1x512xi32>
    %155 = arith.cmpi slt, %153, %154 : vector<1x512xi32>
    %156 = arith.andi %151, %155 : vector<1x512xi1>
    %157 = arith.extui %156 : vector<1x512xi1> to vector<1x512xi32>
    %158 = arith.sitofp %157 : vector<1x512xi32> to vector<1x512xf32>
    %c511_i32 = arith.constant 511 : i32
    %159 = tpu.dynamic_rotate %36 by %c511_i32 dim 1 : vector<8x512xf32>, i32 -> vector<8x512xf32>
    %160 = vector.broadcast %158 : vector<1x512xf32> to vector<8x512xf32>
    %161 = arith.mulf %159, %160 : vector<8x512xf32>
    %c40 = arith.constant 40 : index
    %c0_60 = arith.constant 0 : index
    %162 = vector.load %arg11[%c40, %c0_60] : memref<72x512xf32, #tpu.memory_space<vmem>>, vector<8x512xf32>
    tpu.vector_store %arg11[%c40, %c0_60], %161 {strides = array<i32>} : memref<72x512xf32, #tpu.memory_space<vmem>>, vector<8x512xf32>,
    %c1_i32_61 = arith.constant 1 : i32
    %163 = vector.broadcast %c1_i32_61 : i32 to vector<1x512xi32>
    %164 = arith.addi %6, %163 : vector<1x512xi32>
    %c0_i32_62 = arith.constant 0 : i32
    %165 = vector.broadcast %c0_i32_62 : i32 to vector<1x512xi32>
    %166 = arith.cmpi sge, %164, %165 : vector<1x512xi32>
    %c1_i32_63 = arith.constant 1 : i32
    %167 = vector.broadcast %c1_i32_63 : i32 to vector<1x512xi32>
    %168 = arith.addi %6, %167 : vector<1x512xi32>
    %c16_i32_64 = arith.constant 16 : i32
    %169 = vector.broadcast %c16_i32_64 : i32 to vector<1x512xi32>
    %170 = arith.cmpi slt, %168, %169 : vector<1x512xi32>
    %171 = arith.andi %166, %170 : vector<1x512xi1>
    %c-1_i32_65 = arith.constant -1 : i32
    %172 = vector.broadcast %c-1_i32_65 : i32 to vector<1x512xi32>
    %173 = arith.addi %2, %172 : vector<1x512xi32>
    %c0_i32_66 = arith.constant 0 : i32
    %174 = vector.broadcast %c0_i32_66 : i32 to vector<1x512xi32>
    %175 = arith.cmpi sge, %173, %174 : vector<1x512xi32>
    %176 = arith.andi %171, %175 : vector<1x512xi1>
    %c-1_i32_67 = arith.constant -1 : i32
    %177 = vector.broadcast %c-1_i32_67 : i32 to vector<1x512xi32>
    %178 = arith.addi %2, %177 : vector<1x512xi32>
    %c16_i32_68 = arith.constant 16 : i32
    %179 = vector.broadcast %c16_i32_68 : i32 to vector<1x512xi32>
    %180 = arith.cmpi slt, %178, %179 : vector<1x512xi32>
    %181 = arith.andi %176, %180 : vector<1x512xi1>
    %182 = arith.extui %181 : vector<1x512xi1> to vector<1x512xi32>
    %183 = arith.sitofp %182 : vector<1x512xi32> to vector<1x512xf32>
    %c497_i32 = arith.constant 497 : i32
    %184 = tpu.dynamic_rotate %36 by %c497_i32 dim 1 : vector<8x512xf32>, i32 -> vector<8x512xf32>
    %185 = vector.broadcast %183 : vector<1x512xf32> to vector<8x512xf32>
    %186 = arith.mulf %184, %185 : vector<8x512xf32>
    %c48 = arith.constant 48 : index
    %c0_69 = arith.constant 0 : index
    %187 = vector.load %arg11[%c48, %c0_69] : memref<72x512xf32, #tpu.memory_space<vmem>>, vector<8x512xf32>
    tpu.vector_store %arg11[%c48, %c0_69], %186 {strides = array<i32>} : memref<72x512xf32, #tpu.memory_space<vmem>>, vector<8x512xf32>,
    %c1_i32_70 = arith.constant 1 : i32
    %188 = vector.broadcast %c1_i32_70 : i32 to vector<1x512xi32>
    %189 = arith.addi %6, %188 : vector<1x512xi32>
    %c0_i32_71 = arith.constant 0 : i32
    %190 = vector.broadcast %c0_i32_71 : i32 to vector<1x512xi32>
    %191 = arith.cmpi sge, %189, %190 : vector<1x512xi32>
    %c1_i32_72 = arith.constant 1 : i32
    %192 = vector.broadcast %c1_i32_72 : i32 to vector<1x512xi32>
    %193 = arith.addi %6, %192 : vector<1x512xi32>
    %c16_i32_73 = arith.constant 16 : i32
    %194 = vector.broadcast %c16_i32_73 : i32 to vector<1x512xi32>
    %195 = arith.cmpi slt, %193, %194 : vector<1x512xi32>
    %196 = arith.andi %191, %195 : vector<1x512xi1>
    %c0_i32_74 = arith.constant 0 : i32
    %197 = vector.broadcast %c0_i32_74 : i32 to vector<1x512xi32>
    %198 = arith.addi %2, %197 : vector<1x512xi32>
    %c0_i32_75 = arith.constant 0 : i32
    %199 = vector.broadcast %c0_i32_75 : i32 to vector<1x512xi32>
    %200 = arith.cmpi sge, %198, %199 : vector<1x512xi32>
    %201 = arith.andi %196, %200 : vector<1x512xi1>
    %c0_i32_76 = arith.constant 0 : i32
    %202 = vector.broadcast %c0_i32_76 : i32 to vector<1x512xi32>
    %203 = arith.addi %2, %202 : vector<1x512xi32>
    %c16_i32_77 = arith.constant 16 : i32
    %204 = vector.broadcast %c16_i32_77 : i32 to vector<1x512xi32>
    %205 = arith.cmpi slt, %203, %204 : vector<1x512xi32>
    %206 = arith.andi %201, %205 : vector<1x512xi1>
    %207 = arith.extui %206 : vector<1x512xi1> to vector<1x512xi32>
    %208 = arith.sitofp %207 : vector<1x512xi32> to vector<1x512xf32>
    %c496_i32 = arith.constant 496 : i32
    %209 = tpu.dynamic_rotate %36 by %c496_i32 dim 1 : vector<8x512xf32>, i32 -> vector<8x512xf32>
    %210 = vector.broadcast %208 : vector<1x512xf32> to vector<8x512xf32>
    %211 = arith.mulf %209, %210 : vector<8x512xf32>
    %c56 = arith.constant 56 : index
    %c0_78 = arith.constant 0 : index
    %212 = vector.load %arg11[%c56, %c0_78] : memref<72x512xf32, #tpu.memory_space<vmem>>, vector<8x512xf32>
    tpu.vector_store %arg11[%c56, %c0_78], %211 {strides = array<i32>} : memref<72x512xf32, #tpu.memory_space<vmem>>, vector<8x512xf32>,
    %c1_i32_79 = arith.constant 1 : i32
    %213 = vector.broadcast %c1_i32_79 : i32 to vector<1x512xi32>
    %214 = arith.addi %6, %213 : vector<1x512xi32>
    %c0_i32_80 = arith.constant 0 : i32
    %215 = vector.broadcast %c0_i32_80 : i32 to vector<1x512xi32>
    %216 = arith.cmpi sge, %214, %215 : vector<1x512xi32>
    %c1_i32_81 = arith.constant 1 : i32
    %217 = vector.broadcast %c1_i32_81 : i32 to vector<1x512xi32>
    %218 = arith.addi %6, %217 : vector<1x512xi32>
    %c16_i32_82 = arith.constant 16 : i32
    %219 = vector.broadcast %c16_i32_82 : i32 to vector<1x512xi32>
    %220 = arith.cmpi slt, %218, %219 : vector<1x512xi32>
    %221 = arith.andi %216, %220 : vector<1x512xi1>
    %c1_i32_83 = arith.constant 1 : i32
    %222 = vector.broadcast %c1_i32_83 : i32 to vector<1x512xi32>
    %223 = arith.addi %2, %222 : vector<1x512xi32>
    %c0_i32_84 = arith.constant 0 : i32
    %224 = vector.broadcast %c0_i32_84 : i32 to vector<1x512xi32>
    %225 = arith.cmpi sge, %223, %224 : vector<1x512xi32>
    %226 = arith.andi %221, %225 : vector<1x512xi1>
    %c1_i32_85 = arith.constant 1 : i32
    %227 = vector.broadcast %c1_i32_85 : i32 to vector<1x512xi32>
    %228 = arith.addi %2, %227 : vector<1x512xi32>
    %c16_i32_86 = arith.constant 16 : i32
    %229 = vector.broadcast %c16_i32_86 : i32 to vector<1x512xi32>
    %230 = arith.cmpi slt, %228, %229 : vector<1x512xi32>
    %231 = arith.andi %226, %230 : vector<1x512xi1>
    %232 = arith.extui %231 : vector<1x512xi1> to vector<1x512xi32>
    %233 = arith.sitofp %232 : vector<1x512xi32> to vector<1x512xf32>
    %c495_i32 = arith.constant 495 : i32
    %234 = tpu.dynamic_rotate %36 by %c495_i32 dim 1 : vector<8x512xf32>, i32 -> vector<8x512xf32>
    %235 = vector.broadcast %233 : vector<1x512xf32> to vector<8x512xf32>
    %236 = arith.mulf %234, %235 : vector<8x512xf32>
    %c64 = arith.constant 64 : index
    %c0_87 = arith.constant 0 : index
    %237 = vector.load %arg11[%c64, %c0_87] : memref<72x512xf32, #tpu.memory_space<vmem>>, vector<8x512xf32>
    tpu.vector_store %arg11[%c64, %c0_87], %236 {strides = array<i32>} : memref<72x512xf32, #tpu.memory_space<vmem>>, vector<8x512xf32>,
    %c0_88 = arith.constant 0 : index
    %c0_89 = arith.constant 0 : index
    %238 = vector.load %arg2[%c0_88, %c0_89] : memref<8x72xf32, #tpu.memory_space<vmem>>, vector<8x72xf32>
    %c0_90 = arith.constant 0 : index
    %c0_91 = arith.constant 0 : index
    %239 = vector.load %arg11[%c0_90, %c0_91] : memref<72x512xf32, #tpu.memory_space<vmem>>, vector<72x512xf32>
    %cst_92 = arith.constant dense<0.000000e+00> : vector<8x512xf32>
    %240 = tpu.matmul %238, %239, %cst_92 {dimension_numbers = #tpu.dot_dimension_numbers<[1], [0], [0], [1], [0, 0, 1, 1], [], []>} : vector<8x72xf32>, vector<72x512xf32>, vector<8x512xf32> -> vector<8x512xf32>
    %cst_93 = arith.constant dense<0.000000e+00> : vector<8xf32>
    %241 = vector.multi_reduction <add>, %240, %cst_93 [1] : vector<8x512xf32> to vector<8xf32>
    %242 = vector.shape_cast %241 : vector<8xf32> to vector<8x1xf32>
    %243 = arith.mulf %240, %240 : vector<8x512xf32>
    %cst_94 = arith.constant dense<0.000000e+00> : vector<8xf32>
    %244 = vector.multi_reduction <add>, %243, %cst_94 [1] : vector<8x512xf32> to vector<8xf32>
    %245 = vector.shape_cast %244 : vector<8xf32> to vector<8x1xf32>
    %cst_95 = arith.constant 0.001953125 : f32
    %246 = vector.broadcast %cst_95 : f32 to vector<8x1xf32>
    %247 = arith.mulf %242, %246 : vector<8x1xf32>
    %cst_96 = arith.constant 0.001953125 : f32
    %248 = vector.broadcast %cst_96 : f32 to vector<8x1xf32>
    %249 = arith.mulf %245, %248 : vector<8x1xf32>
    %250 = arith.mulf %247, %247 : vector<8x1xf32>
    %251 = arith.subf %249, %250 : vector<8x1xf32>
    %cst_97 = arith.constant 0.000000e+00 : f32
    %252 = vector.broadcast %cst_97 : f32 to vector<8x1xf32>
    %253 = arith.maximumf %251, %252 : vector<8x1xf32>
    %c0_98 = arith.constant 0 : index
    %c0_99 = arith.constant 0 : index
    %254 = vector.load %arg6[%c0_98, %c0_99] : memref<8x1xf32, #tpu.memory_space<vmem>>, vector<8x1xf32>
    %cst_100 = arith.constant 9.99999974E-6 : f32
    %255 = vector.broadcast %cst_100 : f32 to vector<8x1xf32>
    %256 = arith.addf %253, %255 : vector<8x1xf32>
    %257 = math.rsqrt %256 : vector<8x1xf32>
    %258 = arith.mulf %254, %257 : vector<8x1xf32>
    %c0_101 = arith.constant 0 : index
    %c0_102 = arith.constant 0 : index
    %259 = vector.load %arg7[%c0_101, %c0_102] : memref<8x1xf32, #tpu.memory_space<vmem>>, vector<8x1xf32>
    %260 = arith.mulf %247, %258 : vector<8x1xf32>
    %261 = arith.subf %259, %260 : vector<8x1xf32>
    %262 = vector.broadcast %258 : vector<8x1xf32> to vector<8x512xf32>
    %263 = arith.mulf %240, %262 : vector<8x512xf32>
    %264 = vector.broadcast %261 : vector<8x1xf32> to vector<8x512xf32>
    %265 = arith.addf %263, %264 : vector<8x512xf32>
    %cst_103 = arith.constant 0.000000e+00 : f32
    %266 = vector.broadcast %cst_103 : f32 to vector<8x512xf32>
    %267 = arith.maximumf %265, %266 : vector<8x512xf32>
    %c0_104 = arith.constant 0 : index
    %c0_105 = arith.constant 0 : index
    %268 = vector.load %arg3[%c0_104, %c0_105] : memref<32x8xf32, #tpu.memory_space<vmem>>, vector<32x8xf32>
    %cst_106 = arith.constant dense<0.000000e+00> : vector<32x512xf32>
    %269 = tpu.matmul %268, %267, %cst_106 {dimension_numbers = #tpu.dot_dimension_numbers<[1], [0], [0], [1], [0, 0, 1, 1], [], []>} : vector<32x8xf32>, vector<8x512xf32>, vector<32x512xf32> -> vector<32x512xf32>
    %cst_107 = arith.constant dense<0.000000e+00> : vector<32xf32>
    %270 = vector.multi_reduction <add>, %269, %cst_107 [1] : vector<32x512xf32> to vector<32xf32>
    %271 = vector.shape_cast %270 : vector<32xf32> to vector<32x1xf32>
    %272 = arith.mulf %269, %269 : vector<32x512xf32>
    %cst_108 = arith.constant dense<0.000000e+00> : vector<32xf32>
    %273 = vector.multi_reduction <add>, %272, %cst_108 [1] : vector<32x512xf32> to vector<32xf32>
    %274 = vector.shape_cast %273 : vector<32xf32> to vector<32x1xf32>
    %cst_109 = arith.constant 0.001953125 : f32
    %275 = vector.broadcast %cst_109 : f32 to vector<32x1xf32>
    %276 = arith.mulf %271, %275 : vector<32x1xf32>
    %cst_110 = arith.constant 0.001953125 : f32
    %277 = vector.broadcast %cst_110 : f32 to vector<32x1xf32>
    %278 = arith.mulf %274, %277 : vector<32x1xf32>
    %279 = arith.mulf %276, %276 : vector<32x1xf32>
    %280 = arith.subf %278, %279 : vector<32x1xf32>
    %cst_111 = arith.constant 0.000000e+00 : f32
    %281 = vector.broadcast %cst_111 : f32 to vector<32x1xf32>
    %282 = arith.maximumf %280, %281 : vector<32x1xf32>
    %c0_112 = arith.constant 0 : index
    %c0_113 = arith.constant 0 : index
    %283 = vector.load %arg8[%c0_112, %c0_113] : memref<32x1xf32, #tpu.memory_space<vmem>>, vector<32x1xf32>
    %cst_114 = arith.constant 9.99999974E-6 : f32
    %284 = vector.broadcast %cst_114 : f32 to vector<32x1xf32>
    %285 = arith.addf %282, %284 : vector<32x1xf32>
    %286 = math.rsqrt %285 : vector<32x1xf32>
    %287 = arith.mulf %283, %286 : vector<32x1xf32>
    %c0_115 = arith.constant 0 : index
    %c0_116 = arith.constant 0 : index
    %288 = vector.load %arg9[%c0_115, %c0_116] : memref<32x1xf32, #tpu.memory_space<vmem>>, vector<32x1xf32>
    %289 = arith.mulf %276, %287 : vector<32x1xf32>
    %290 = arith.subf %288, %289 : vector<32x1xf32>
    %291 = vector.broadcast %287 : vector<32x1xf32> to vector<32x512xf32>
    %292 = arith.mulf %269, %291 : vector<32x512xf32>
    %293 = vector.broadcast %290 : vector<32x1xf32> to vector<32x512xf32>
    %294 = arith.addf %292, %293 : vector<32x512xf32>
    %c0_117 = arith.constant 0 : index
    %c0_118 = arith.constant 0 : index
    %295 = vector.load %arg10[%c0_117, %c0_118] : memref<32x512xf32, #tpu.memory_space<vmem>>, vector<32x512xf32>
    tpu.vector_store %arg10[%c0_117, %c0_118], %294 {strides = array<i32>} : memref<32x512xf32, #tpu.memory_space<vmem>>, vector<32x512xf32>,
    return
  }
}

</mosaic_0001>

<llo_original>
// kernel: _lambda_.1
$region0: #{_lambda_.1}
  #allocation0 [shape = 'u32[]', space=smem, size = 0x4, offset = 0x4, fixed_abs, tag = 'smem constant byte address 0x4 - core index']
  #allocation1 [shape = 'u32[144,128]{1,0:T(1,128)}', space=vmem, size = 0x12000, scoped, tag = 'internal scratch']
  #allocation2 [shape = 'f32[72,512]{1,0:T(8,128)}', space=vmem, size = 0x24000, scoped, tag = 'scratch operand']
  %s0 = inlined_call_operand.vmem [shape: f32[16,512], index: 0, kind: input, shape index: {}]
  %s1 = inlined_call_operand.vmem [shape: f32[8,16], index: 1, kind: input, shape index: {}]
  %s2 = inlined_call_operand.vmem [shape: f32[8,72], index: 2, kind: input, shape index: {}]
  %s3 = inlined_call_operand.vmem [shape: f32[32,8], index: 3, kind: input, shape index: {}]
  %s4 = inlined_call_operand.vmem [shape: f32[8,1], index: 4, kind: input, shape index: {}]
  %s5 = inlined_call_operand.vmem [shape: f32[8,1], index: 5, kind: input, shape index: {}]
  %s6 = inlined_call_operand.vmem [shape: f32[8,1], index: 6, kind: input, shape index: {}]
  %s7 = inlined_call_operand.vmem [shape: f32[8,1], index: 7, kind: input, shape index: {}]
  %s8 = inlined_call_operand.vmem [shape: f32[32,1], index: 8, kind: input, shape index: {}]
  %s9 = inlined_call_operand.vmem [shape: f32[32,1], index: 9, kind: input, shape index: {}]
  %s10 = inlined_call_operand.vmem [shape: f32[32,512], index: 10, kind: output, shape index: {}]
  %s11 = sld [smem:[#allocation0]]
  $region50: #{_lambda_.1} parent=0
    _
  %s13 = ssub.s32 1, %s11
  %s14 = scalar_select 0, %s13, %s11
  // Predicated region
  $region2: #{_lambda_.1} parent=0 // pred_check
    _
  $region3: #{_lambda_.1} parent=0 // pred_check_branch
    %16 = sbr.rel (0) target = $region5
  $region4: #{_lambda_.1} parent=0 // pred_region
    _
  $region5: #{_lambda_.1} parent=0 // pred_fallthru
    _
  // Predicated region
  $region6: #{_lambda_.1} parent=0 // pred_check
    _
  $region7: #{_lambda_.1} parent=0 // pred_check_branch
    %18 = sbr.rel (0) target = $region9
  $region8: #{_lambda_.1} parent=0 // pred_region
    _
  $region9: #{_lambda_.1} parent=0 // pred_fallthru
    _
  // Predicated region
  $region10: #{_lambda_.1} parent=0 // pred_check
    _
  $region11: #{_lambda_.1} parent=0 // pred_check_branch
    %20 = sbr.rel (0) target = $region13
  $region12: #{_lambda_.1} parent=0 // pred_region
    _
  $region13: #{_lambda_.1} parent=0 // pred_fallthru
    _
  // Predicated region
  $region14: #{_lambda_.1} parent=0 // pred_check
    _
  $region15: #{_lambda_.1} parent=0 // pred_check_branch
    %22 = sbr.rel (0) target = $region17
  $region16: #{_lambda_.1} parent=0 // pred_region
    _
  $region17: #{_lambda_.1} parent=0 // pred_fallthru
    _
  // Predicated region
  $region18: #{_lambda_.1} parent=0 // pred_check
    _
  $region19: #{_lambda_.1} parent=0 // pred_check_branch
    %24 = sbr.rel (0) target = $region21
  $region20: #{_lambda_.1} parent=0 // pred_region
    _
  $region21: #{_lambda_.1} parent=0 // pred_fallthru
    _
  // Predicated region
  $region22: #{_lambda_.1} parent=0 // pred_check
    _
  $region23: #{_lambda_.1} parent=0 // pred_check_branch
    %26 = sbr.rel (0) target = $region25
  $region24: #{_lambda_.1} parent=0 // pred_region
    _
  $region25: #{_lambda_.1} parent=0 // pred_fallthru
    _
  // Predicated region
  $region26: #{_lambda_.1} parent=0 // pred_check
    _
  $region27: #{_lambda_.1} parent=0 // pred_check_branch
    %28 = sbr.rel (0) target = $region29
  $region28: #{_lambda_.1} parent=0 // pred_region
    _
  $region29: #{_lambda_.1} parent=0 // pred_fallthru
    _
  // Predicated region
  $region30: #{_lambda_.1} parent=0 // pred_check
    _
  $region31: #{_lambda_.1} parent=0 // pred_check_branch
    %30 = sbr.rel (0) target = $region33
  $region32: #{_lambda_.1} parent=0 // pred_region
    _
  $region33: #{_lambda_.1} parent=0 // pred_fallthru
    _
  // Predicated region
  $region34: #{_lambda_.1} parent=0 // pred_check
    _
  $region35: #{_lambda_.1} parent=0 // pred_check_branch
    %32 = sbr.rel (0) target = $region37
  $region36: #{_lambda_.1} parent=0 // pred_region
    _
  $region37: #{_lambda_.1} parent=0 // pred_fallthru
    _
  // Predicated region
  $region38: #{_lambda_.1} parent=0 // pred_check
    _
  $region39: #{_lambda_.1} parent=0 // pred_check_branch
    %34 = sbr.rel (0) target = $region41
  $region40: #{_lambda_.1} parent=0 // pred_region
    _
  $region41: #{_lambda_.1} parent=0 // pred_fallthru
    _
  %v35 = vlaneseq
  %v36 = vand.u32 %v35, 127
  %v37 = vadd.s32 %v36, 128
  %v38 = vadd.s32 %v36, 256
  %v39 = vadd.s32 %v36, 384
  %v40 = vand.u32 %v36, 15
  %v41 = vand.u32 %v37, 15
  %v42 = vand.u32 %v38, 15
  %v43 = vand.u32 %v39, 15
  %v44 = vshra.s32 %v36, 4
  %v45 = vshra.s32 %v37, 4
  %v46 = vshra.s32 %v38, 4
  %v47 = vshra.s32 %v39, 4
  %v48 = vand.u32 %v44, 15
  %v49 = vand.u32 %v45, 15
  %v50 = vand.u32 %v46, 15
  %v51 = vand.u32 %v47, 15
  %v52 = vld [vmem:[%s1] sm:$0xff]
  %v53 = vld [vmem:[%s0] sm:$0xff]
  %v54 = vld [vmem:[%s0 + $0x8] sm:$0xff]
  %v55 = vld [vmem:[%s0 + $0x10] sm:$0xff]
  %v56 = vld [vmem:[%s0 + $0x18] sm:$0xff]
  %v57 = vld [vmem:[%s0 + $0x20] sm:$0xff]
  %v58 = vld [vmem:[%s0 + $0x28] sm:$0xff]
  %v59 = vld [vmem:[%s0 + $0x30] sm:$0xff]
  %v60 = vld [vmem:[%s0 + $0x38] sm:$0xff]
  %vm61 = vcmask 130048
  %v63 = vsel %vm61, %v52, 0
  %65 = vmatprep.subr.mxu0 %v54
  %66 = vmatpush1.msra.mxu0 %v53
  %67 = vmatprep.subr.mxu0 %v58
  %68 = vmatpush1.msra.mxu0 %v57
  %69 = vmatprep.subr.mxu0 0.0
  %70 = vmatpush1.msra.mxu0 0.0
  %71 = vmatprep.subr.mxu0 0.0
  %72 = vmatpush1.msra.mxu0 0.0
  %73 = vmatprep.subr.mxu0 0.0
  %74 = vmatpush1.msra.mxu0 0.0
  %75 = vmatprep.subr.mxu0 0.0
  %76 = vmatpush1.msra.mxu0 0.0
  %77 = vmatprep.subr.mxu0 0.0
  %78 = vmatpush1.msra.mxu0 0.0
  %79 = vmatprep.subr.mxu0 0.0
  %80 = vmatpush1.msra.mxu0 0.0
  %81 = vmatprep.subr.mxu0 0.0
  %82 = vmatpush1.msra.mxu0 0.0
  %83 = vmatprep.subr.mxu0 0.0
  %84 = vmatpush1.msra.mxu0 0.0
  %85 = vmatprep.subr.mxu0 0.0
  %86 = vmatpush1.msra.mxu0 0.0
  %87 = vmatprep.subr.mxu0 0.0
  %88 = vmatpush1.msra.mxu0 0.0
  %89 = vmatprep.subr.mxu0 0.0
  %90 = vmatpush1.msra.mxu0 0.0
  %91 = vmatprep.subr.mxu0 0.0
  %92 = vmatpush1.msra.mxu0 0.0
  %93 = vmatprep.subr.mxu0 0.0
  %94 = vmatpush1.msra.mxu0 0.0
  %95 = vmatprep.subr.mxu0 0.0
  %96 = vmatpush1.msra.mxu0 0.0
  %97 = vmatprep.subr.mxu0 0.0
  %98 = vmatpush1.msra.mxu0 0.0
  %99 = vmatprep.subr.mxu0 0.0
  %100 = vmatpush1.msra.mxu0 0.0
  %101 = vmatprep.subr.mxu0 0.0
  %102 = vmatpush1.msra.mxu0 0.0
  %103 = vmatprep.subr.mxu0 0.0
  %104 = vmatpush1.msra.mxu0 0.0
  %105 = vmatprep.subr.mxu0 0.0
  %106 = vmatpush1.msra.mxu0 0.0
  %107 = vmatprep.subr.mxu0 0.0
  %108 = vmatpush1.msra.mxu0 0.0
  %109 = vmatprep.subr.mxu0 0.0
  %110 = vmatpush1.msra.mxu0 0.0
  %111 = vmatprep.subr.mxu0 0.0
  %112 = vmatpush1.msra.mxu0 0.0
  %113 = vmatprep.subr.mxu0 0.0
  %114 = vmatpush1.msra.mxu0 0.0
  %115 = vmatprep.subr.mxu0 0.0
  %116 = vmatpush1.msra.mxu0 0.0
  %117 = vmatprep.subr.mxu0 0.0
  %118 = vmatpush1.msra.mxu0 0.0
  %119 = vmatprep.subr.mxu0 0.0
  %120 = vmatpush1.msra.mxu0 0.0
  %121 = vmatprep.subr.mxu0 0.0
  %122 = vmatpush1.msra.mxu0 0.0
  %123 = vmatprep.subr.mxu0 0.0
  %124 = vmatpush1.msra.mxu0 0.0
  %125 = vmatprep.subr.mxu0 0.0
  %126 = vmatpush1.msra.mxu0 0.0
  %127 = vmatprep.subr.mxu0 0.0
  %128 = vmatpush1.msra.mxu0 0.0
  %129 = vmatprep.mubr.f32.mxu0 0.0
  %130 = vmatmul.mubr.f32.gmra.mrb[0].mxu0 %v63
  %v131 = vpop.f32.mrb[0].mxu0
  %v132 = vadd.f32 0.0, %v131
  %v133 = vpop.f32.mrb[0].mxu0
  %v134 = vadd.f32 0.0, %v133
  %135 = vdwg.mxu0
  %136 = vmatprep.subr.mxu0 %v56
  %137 = vmatpush1.msra.mxu0 %v55
  %138 = vmatprep.subr.mxu0 %v60
  %139 = vmatpush1.msra.mxu0 %v59
  %140 = vmatprep.subr.mxu0 0.0
  %141 = vmatpush1.msra.mxu0 0.0
  %142 = vmatprep.subr.mxu0 0.0
  %143 = vmatpush1.msra.mxu0 0.0
  %144 = vmatprep.subr.mxu0 0.0
  %145 = vmatpush1.msra.mxu0 0.0
  %146 = vmatprep.subr.mxu0 0.0
  %147 = vmatpush1.msra.mxu0 0.0
  %148 = vmatprep.subr.mxu0 0.0
  %149 = vmatpush1.msra.mxu0 0.0
  %150 = vmatprep.subr.mxu0 0.0
  %151 = vmatpush1.msra.mxu0 0.0
  %152 = vmatprep.subr.mxu0 0.0
  %153 = vmatpush1.msra.mxu0 0.0
  %154 = vmatprep.subr.mxu0 0.0
  %155 = vmatpush1.msra.mxu0 0.0
  %156 = vmatprep.subr.mxu0 0.0
  %157 = vmatpush1.msra.mxu0 0.0
  %158 = vmatprep.subr.mxu0 0.0
  %159 = vmatpush1.msra.mxu0 0.0
  %160 = vmatprep.subr.mxu0 0.0
  %161 = vmatpush1.msra.mxu0 0.0
  %162 = vmatprep.subr.mxu0 0.0
  %163 = vmatpush1.msra.mxu0 0.0
  %164 = vmatprep.subr.mxu0 0.0
  %165 = vmatpush1.msra.mxu0 0.0
  %166 = vmatprep.subr.mxu0 0.0
  %167 = vmatpush1.msra.mxu0 0.0
  %168 = vmatprep.subr.mxu0 0.0
  %169 = vmatpush1.msra.mxu0 0.0
  %170 = vmatprep.subr.mxu0 0.0
  %171 = vmatpush1.msra.mxu0 0.0
  %172 = vmatprep.subr.mxu0 0.0
  %173 = vmatpush1.msra.mxu0 0.0
  %174 = vmatprep.subr.mxu0 0.0
  %175 = vmatpush1.msra.mxu0 0.0
  %176 = vmatprep.subr.mxu0 0.0
  %177 = vmatpush1.msra.mxu0 0.0
  %178 = vmatprep.subr.mxu0 0.0
  %179 = vmatpush1.msra.mxu0 0.0
  %180 = vmatprep.subr.mxu0 0.0
  %181 = vmatpush1.msra.mxu0 0.0
  %182 = vmatprep.subr.mxu0 0.0
  %183 = vmatpush1.msra.mxu0 0.0
  %184 = vmatprep.subr.mxu0 0.0
  %185 = vmatpush1.msra.mxu0 0.0
  %186 = vmatprep.subr.mxu0 0.0
  %187 = vmatpush1.msra.mxu0 0.0
  %188 = vmatprep.subr.mxu0 0.0
  %189 = vmatpush1.msra.mxu0 0.0
  %190 = vmatprep.subr.mxu0 0.0
  %191 = vmatpush1.msra.mxu0 0.0
  %192 = vmatprep.subr.mxu0 0.0
  %193 = vmatpush1.msra.mxu0 0.0
  %194 = vmatprep.subr.mxu0 0.0
  %195 = vmatpush1.msra.mxu0 0.0
  %196 = vmatprep.subr.mxu0 0.0
  %197 = vmatpush1.msra.mxu0 0.0
  %198 = vmatprep.subr.mxu0 0.0
  %199 = vmatpush1.msra.mxu0 0.0
  %200 = vmatprep.mubr.f32.mxu0 0.0
  %201 = vmatmul.mubr.f32.gmra.mrb[0].mxu0 %v63
  %v202 = vpop.f32.mrb[0].mxu0
  %v203 = vadd.f32 0.0, %v202
  %v204 = vpop.f32.mrb[0].mxu0
  %v205 = vadd.f32 0.0, %v204
  %206 = vdwg.mxu0
  %v207 = vadd.f32 %v132, %v134
  %v208 = vadd.f32 %v207, %v203
  %v209 = vadd.f32 %v208, %v205
  %210 = vadd.xlane.f32.xlu0 %v209
  %v211 = vpop.xlane.xlu0 %210
  %v212 = vmul.f32 %v132, %v132
  %v213 = vmul.f32 %v134, %v134
  %v214 = vmul.f32 %v203, %v203
  %v215 = vmul.f32 %v205, %v205
  %v216 = vadd.f32 %v212, %v213
  %v217 = vadd.f32 %v216, %v214
  %v218 = vadd.f32 %v217, %v215
  %219 = vadd.xlane.f32.xlu0 %v218
  %v220 = vpop.xlane.xlu0 %219
  %v221 = vmul.f32 %v211, 0.001953125
  %v222 = vmul.f32 %v220, 0.001953125
  %v223 = vmul.f32 %v221, %v221
  %v224 = vsub.f32 %v222, %v223
  %v225 = vmax.f32 %v224, 0.0
  %v226 = vld [vmem:[%s4] sm:$0xff]
  %v227 = vadd.f32 %v225, 1e-05
  %v228 = vrsqrt.pop %v227
  %v229 = vmul.f32 %v226, %v228
  %v230 = vld [vmem:[%s5] sm:$0xff]
  %v231 = vmul.f32 %v221, %v229
  %v232 = vsub.f32 %v230, %v231
  %234 = vset.pattern.permute.xlu0 0
  %235 = vperm.xlu0 %234, %v229
  %v236 = vpop.permute.xlu0 %235
  %v238 = vmul.f32 %v132, %v236
  %v239 = vmul.f32 %v134, %v236
  %v240 = vmul.f32 %v203, %v236
  %v241 = vmul.f32 %v205, %v236
  %243 = vset.pattern.permute.xlu0 0
  %244 = vperm.xlu0 %243, %v232
  %v245 = vpop.permute.xlu0 %244
  %v247 = vadd.f32 %v238, %v245
  %v248 = vadd.f32 %v239, %v245
  %v249 = vadd.f32 %v240, %v245
  %v250 = vadd.f32 %v241, %v245
  %v251 = vmax.f32 %v247, 0.0
  %v252 = vmax.f32 %v248, 0.0
  %v253 = vmax.f32 %v249, 0.0
  %v254 = vmax.f32 %v250, 0.0
  %v255 = vadd.s32 %v48, 4294967295
  %v256 = vadd.s32 %v49, 4294967295
  %v257 = vadd.s32 %v50, 4294967295
  %v258 = vadd.s32 %v51, 4294967295
  %vm259 = vcmp.ge.s32.totalorder %v255, 0
  %vm260 = vcmp.ge.s32.totalorder %v256, 0
  %vm261 = vcmp.ge.s32.totalorder %v257, 0
  %vm262 = vcmp.ge.s32.totalorder %v258, 0
  %vm263 = vcmp.lt.s32.totalorder %v255, 16
  %vm264 = vcmp.lt.s32.totalorder %v256, 16
  %vm265 = vcmp.lt.s32.totalorder %v257, 16
  %vm266 = vcmp.lt.s32.totalorder %v258, 16
  %vm267 = vmand %vm259, %vm263
  %vm268 = vmand %vm260, %vm264
  %vm269 = vmand %vm261, %vm265
  %vm270 = vmand %vm262, %vm266
  %v271 = vadd.s32 %v40, 4294967295
  %v272 = vadd.s32 %v41, 4294967295
  %v273 = vadd.s32 %v42, 4294967295
  %v274 = vadd.s32 %v43, 4294967295
  %vm275 = vcmp.ge.s32.totalorder %v271, 0
  %vm276 = vcmp.ge.s32.totalorder %v272, 0
  %vm277 = vcmp.ge.s32.totalorder %v273, 0
  %vm278 = vcmp.ge.s32.totalorder %v274, 0
  %vm279 = vmand %vm267, %vm275
  %vm280 = vmand %vm268, %vm276
  %vm281 = vmand %vm269, %vm277
  %vm282 = vmand %vm270, %vm278
  %vm283 = vcmp.lt.s32.totalorder %v271, 16
  %vm284 = vcmp.lt.s32.totalorder %v272, 16
  %vm285 = vcmp.lt.s32.totalorder %v273, 16
  %vm286 = vcmp.lt.s32.totalorder %v274, 16
  %vm287 = vmand %vm279, %vm283
  %vm288 = vmand %vm280, %vm284
  %vm289 = vmand %vm281, %vm285
  %vm290 = vmand %vm282, %vm286
  %v291 = vsel %vm287, 1, 0
  %v292 = vsel %vm288, 1, 0
  %v293 = vsel %vm289, 1, 0
  %v294 = vsel %vm290, 1, 0
  %v295 = vcvt.s32.f32 %v291
  %v296 = vcvt.s32.f32 %v292
  %v297 = vcvt.s32.f32 %v293
  %v298 = vcvt.s32.f32 %v294
  %299 = vrot.lane.b32.xlu0 %v251, 17
  %v300 = vpop.permute.xlu0 %299
  %301 = vrot.lane.b32.xlu0 %v252, 17
  %v302 = vpop.permute.xlu0 %301
  %303 = vrot.lane.b32.xlu0 %v253, 17
  %v304 = vpop.permute.xlu0 %303
  %305 = vrot.lane.b32.xlu0 %v254, 17
  %v306 = vpop.permute.xlu0 %305
  %vm307 = vcmp.lt.s32.totalorder %v36, 17
  %v308 = vsel %vm307, %v304, %v306
  %v309 = vsel %vm307, %v302, %v304
  %v310 = vsel %vm307, %v300, %v302
  %v311 = vsel %vm307, %v306, %v300
  %v312 = vmul.f32 %v311, %v295
  %v313 = vmul.f32 %v310, %v296
  %v314 = vmul.f32 %v309, %v297
  %v315 = vmul.f32 %v308, %v298
  %316 = vst [vmem:[#allocation2] sm:$0xff] %v312
  %317 = vst [vmem:[#allocation2 + $0x8] sm:$0xff] %v313
  %318 = vst [vmem:[#allocation2 + $0x10] sm:$0xff] %v314
  %319 = vst [vmem:[#allocation2 + $0x18] sm:$0xff] %v315
  %vm320 = vcmp.ge.s32.totalorder %v40, 0
  %vm321 = vcmp.ge.s32.totalorder %v41, 0
  %vm322 = vcmp.ge.s32.totalorder %v42, 0
  %vm323 = vcmp.ge.s32.totalorder %v43, 0
  %vm324 = vmand %vm267, %vm320
  %vm325 = vmand %vm268, %vm321
  %vm326 = vmand %vm269, %vm322
  %vm327 = vmand %vm270, %vm323
  %vm328 = vcmp.lt.s32.totalorder %v40, 16
  %vm329 = vcmp.lt.s32.totalorder %v41, 16
  %vm330 = vcmp.lt.s32.totalorder %v42, 16
  %vm331 = vcmp.lt.s32.totalorder %v43, 16
  %vm332 = vmand %vm324, %vm328
  %vm333 = vmand %vm325, %vm329
  %vm334 = vmand %vm326, %vm330
  %vm335 = vmand %vm327, %vm331
  %v336 = vsel %vm332, 1, 0
  %v337 = vsel %vm333, 1, 0
  %v338 = vsel %vm334, 1, 0
  %v339 = vsel %vm335, 1, 0
  %v340 = vcvt.s32.f32 %v336
  %v341 = vcvt.s32.f32 %v337
  %v342 = vcvt.s32.f32 %v338
  %v343 = vcvt.s32.f32 %v339
  %344 = vrot.lane.b32.xlu0 %v251, 16
  %v345 = vpop.permute.xlu0 %344
  %346 = vrot.lane.b32.xlu0 %v252, 16
  %v347 = vpop.permute.xlu0 %346
  %348 = vrot.lane.b32.xlu0 %v253, 16
  %v349 = vpop.permute.xlu0 %348
  %350 = vrot.lane.b32.xlu0 %v254, 16
  %v351 = vpop.permute.xlu0 %350
  %vm352 = vcmp.lt.s32.totalorder %v36, 16
  %v353 = vsel %vm352, %v349, %v351
  %v354 = vsel %vm352, %v347, %v349
  %v355 = vsel %vm352, %v345, %v347
  %v356 = vsel %vm352, %v351, %v345
  %v357 = vmul.f32 %v356, %v340
  %v358 = vmul.f32 %v355, %v341
  %v359 = vmul.f32 %v354, %v342
  %v360 = vmul.f32 %v353, %v343
  %361 = vst [vmem:[#allocation2 + $0x20] sm:$0xff] %v357
  %362 = vst [vmem:[#allocation2 + $0x28] sm:$0xff] %v358
  %363 = vst [vmem:[#allocation2 + $0x30] sm:$0xff] %v359
  %364 = vst [vmem:[#allocation2 + $0x38] sm:$0xff] %v360
  %v365 = vadd.s32 %v40, 1
  %v366 = vadd.s32 %v41, 1
  %v367 = vadd.s32 %v42, 1
  %v368 = vadd.s32 %v43, 1
  %vm369 = vcmp.ge.s32.totalorder %v365, 0
  %vm370 = vcmp.ge.s32.totalorder %v366, 0
  %vm371 = vcmp.ge.s32.totalorder %v367, 0
  %vm372 = vcmp.ge.s32.totalorder %v368, 0
  %vm373 = vmand %vm267, %vm369
  %vm374 = vmand %vm268, %vm370
  %vm375 = vmand %vm269, %vm371
  %vm376 = vmand %vm270, %vm372
  %vm377 = vcmp.lt.s32.totalorder %v365, 16
  %vm378 = vcmp.lt.s32.totalorder %v366, 16
  %vm379 = vcmp.lt.s32.totalorder %v367, 16
  %vm380 = vcmp.lt.s32.totalorder %v368, 16
  %vm381 = vmand %vm373, %vm377
  %vm382 = vmand %vm374, %vm378
  %vm383 = vmand %vm375, %vm379
  %vm384 = vmand %vm376, %vm380
  %v385 = vsel %vm381, 1, 0
  %v386 = vsel %vm382, 1, 0
  %v387 = vsel %vm383, 1, 0
  %v388 = vsel %vm384, 1, 0
  %v389 = vcvt.s32.f32 %v385
  %v390 = vcvt.s32.f32 %v386
  %v391 = vcvt.s32.f32 %v387
  %v392 = vcvt.s32.f32 %v388
  %393 = vrot.lane.b32.xlu0 %v251, 15
  %v394 = vpop.permute.xlu0 %393
  %395 = vrot.lane.b32.xlu0 %v252, 15
  %v396 = vpop.permute.xlu0 %395
  %397 = vrot.lane.b32.xlu0 %v253, 15
  %v398 = vpop.permute.xlu0 %397
  %399 = vrot.lane.b32.xlu0 %v254, 15
  %v400 = vpop.permute.xlu0 %399
  %vm401 = vcmp.lt.s32.totalorder %v36, 15
  %v402 = vsel %vm401, %v398, %v400
  %v403 = vsel %vm401, %v396, %v398
  %v404 = vsel %vm401, %v394, %v396
  %v405 = vsel %vm401, %v400, %v394
  %v406 = vmul.f32 %v405, %v389
  %v407 = vmul.f32 %v404, %v390
  %v408 = vmul.f32 %v403, %v391
  %v409 = vmul.f32 %v402, %v392
  %410 = vst [vmem:[#allocation2 + $0x40] sm:$0xff] %v406
  %411 = vst [vmem:[#allocation2 + $0x48] sm:$0xff] %v407
  %412 = vst [vmem:[#allocation2 + $0x50] sm:$0xff] %v408
  %413 = vst [vmem:[#allocation2 + $0x58] sm:$0xff] %v409
  %vm414 = vcmp.ge.s32.totalorder %v48, 0
  %vm415 = vcmp.ge.s32.totalorder %v49, 0
  %vm416 = vcmp.ge.s32.totalorder %v50, 0
  %vm417 = vcmp.ge.s32.totalorder %v51, 0
  %vm418 = vcmp.lt.s32.totalorder %v48, 16
  %vm419 = vcmp.lt.s32.totalorder %v49, 16
  %vm420 = vcmp.lt.s32.totalorder %v50, 16
  %vm421 = vcmp.lt.s32.totalorder %v51, 16
  %vm422 = vmand %vm414, %vm418
  %vm423 = vmand %vm415, %vm419
  %vm424 = vmand %vm416, %vm420
  %vm425 = vmand %vm417, %vm421
  %vm426 = vmand %vm422, %vm275
  %vm427 = vmand %vm423, %vm276
  %vm428 = vmand %vm424, %vm277
  %vm429 = vmand %vm425, %vm278
  %vm430 = vmand %vm426, %vm283
  %vm431 = vmand %vm427, %vm284
  %vm432 = vmand %vm428, %vm285
  %vm433 = vmand %vm429, %vm286
  %v434 = vsel %vm430, 1, 0
  %v435 = vsel %vm431, 1, 0
  %v436 = vsel %vm432, 1, 0
  %v437 = vsel %vm433, 1, 0
  %v438 = vcvt.s32.f32 %v434
  %v439 = vcvt.s32.f32 %v435
  %v440 = vcvt.s32.f32 %v436
  %v441 = vcvt.s32.f32 %v437
  %442 = vrot.lane.b32.xlu0 %v251, 1
  %v443 = vpop.permute.xlu0 %442
  %444 = vrot.lane.b32.xlu0 %v252, 1
  %v445 = vpop.permute.xlu0 %444
  %446 = vrot.lane.b32.xlu0 %v253, 1
  %v447 = vpop.permute.xlu0 %446
  %448 = vrot.lane.b32.xlu0 %v254, 1
  %v449 = vpop.permute.xlu0 %448
  %vm450 = vcmp.lt.s32.totalorder %v36, 1
  %v451 = vsel %vm450, %v447, %v449
  %v452 = vsel %vm450, %v445, %v447
  %v453 = vsel %vm450, %v443, %v445
  %v454 = vsel %vm450, %v449, %v443
  %v455 = vmul.f32 %v454, %v438
  %v456 = vmul.f32 %v453, %v439
  %v457 = vmul.f32 %v452, %v440
  %v458 = vmul.f32 %v451, %v441
  %459 = vst [vmem:[#allocation2 + $0x60] sm:$0xff] %v455
  %460 = vst [vmem:[#allocation2 + $0x68] sm:$0xff] %v456
  %461 = vst [vmem:[#allocation2 + $0x70] sm:$0xff] %v457
  %462 = vst [vmem:[#allocation2 + $0x78] sm:$0xff] %v458
  %463 = vst [vmem:[#allocation2 + $0x80] sm:$0xff] %v251
  %464 = vst [vmem:[#allocation2 + $0x88] sm:$0xff] %v252
  %465 = vst [vmem:[#allocation2 + $0x90] sm:$0xff] %v253
  %466 = vst [vmem:[#allocation2 + $0x98] sm:$0xff] %v254
  %vm467 = vmand %vm422, %vm369
  %vm468 = vmand %vm423, %vm370
  %vm469 = vmand %vm424, %vm371
  %vm470 = vmand %vm425, %vm372
  %vm471 = vmand %vm467, %vm377
  %vm472 = vmand %vm468, %vm378
  %vm473 = vmand %vm469, %vm379
  %vm474 = vmand %vm470, %vm380
  %v475 = vsel %vm471, 1, 0
  %v476 = vsel %vm472, 1, 0
  %v477 = vsel %vm473, 1, 0
  %v478 = vsel %vm474, 1, 0
  %v479 = vcvt.s32.f32 %v475
  %v480 = vcvt.s32.f32 %v476
  %v481 = vcvt.s32.f32 %v477
  %v482 = vcvt.s32.f32 %v478
  %483 = vrot.lane.b32.xlu0 %v251, 127
  %v484 = vpop.permute.xlu0 %483
  %485 = vrot.lane.b32.xlu0 %v252, 127
  %v486 = vpop.permute.xlu0 %485
  %487 = vrot.lane.b32.xlu0 %v253, 127
  %v488 = vpop.permute.xlu0 %487
  %489 = vrot.lane.b32.xlu0 %v254, 127
  %v490 = vpop.permute.xlu0 %489
  %vm491 = vcmp.lt.s32.totalorder %v36, 127
  %v492 = vsel %vm491, %v488, %v490
  %v493 = vsel %vm491, %v486, %v488
  %v494 = vsel %vm491, %v484, %v486
  %v495 = vsel %vm491, %v490, %v484
  %v496 = vmul.f32 %v494, %v479
  %v497 = vmul.f32 %v493, %v480
  %v498 = vmul.f32 %v492, %v481
  %v499 = vmul.f32 %v495, %v482
  %500 = vst [vmem:[#allocation2 + $0xa0] sm:$0xff] %v496
  %501 = vst [vmem:[#allocation2 + $0xa8] sm:$0xff] %v497
  %502 = vst [vmem:[#allocation2 + $0xb0] sm:$0xff] %v498
  %503 = vst [vmem:[#allocation2 + $0xb8] sm:$0xff] %v499
  %v504 = vadd.s32 %v48, 1
  %v505 = vadd.s32 %v49, 1
  %v506 = vadd.s32 %v50, 1
  %v507 = vadd.s32 %v51, 1
  %vm508 = vcmp.ge.s32.totalorder %v504, 0
  %vm509 = vcmp.ge.s32.totalorder %v505, 0
  %vm510 = vcmp.ge.s32.totalorder %v506, 0
  %vm511 = vcmp.ge.s32.totalorder %v507, 0
  %vm512 = vcmp.lt.s32.totalorder %v504, 16
  %vm513 = vcmp.lt.s32.totalorder %v505, 16
  %vm514 = vcmp.lt.s32.totalorder %v506, 16
  %vm515 = vcmp.lt.s32.totalorder %v507, 16
  %vm516 = vmand %vm508, %vm512
  %vm517 = vmand %vm509, %vm513
  %vm518 = vmand %vm510, %vm514
  %vm519 = vmand %vm511, %vm515
  %vm520 = vmand %vm516, %vm275
  %vm521 = vmand %vm517, %vm276
  %vm522 = vmand %vm518, %vm277
  %vm523 = vmand %vm519, %vm278
  %vm524 = vmand %vm520, %vm283
  %vm525 = vmand %vm521, %vm284
  %vm526 = vmand %vm522, %vm285
  %vm527 = vmand %vm523, %vm286
  %v528 = vsel %vm524, 1, 0
  %v529 = vsel %vm525, 1, 0
  %v530 = vsel %vm526, 1, 0
  %v531 = vsel %vm527, 1, 0
  %v532 = vcvt.s32.f32 %v528
  %v533 = vcvt.s32.f32 %v529
  %v534 = vcvt.s32.f32 %v530
  %v535 = vcvt.s32.f32 %v531
  %536 = vrot.lane.b32.xlu0 %v251, 113
  %v537 = vpop.permute.xlu0 %536
  %538 = vrot.lane.b32.xlu0 %v252, 113
  %v539 = vpop.permute.xlu0 %538
  %540 = vrot.lane.b32.xlu0 %v253, 113
  %v541 = vpop.permute.xlu0 %540
  %542 = vrot.lane.b32.xlu0 %v254, 113
  %v543 = vpop.permute.xlu0 %542
  %vm544 = vcmp.lt.s32.totalorder %v36, 113
  %v545 = vsel %vm544, %v541, %v543
  %v546 = vsel %vm544, %v539, %v541
  %v547 = vsel %vm544, %v537, %v539
  %v548 = vsel %vm544, %v543, %v537
  %v549 = vmul.f32 %v547, %v532
  %v550 = vmul.f32 %v546, %v533
  %v551 = vmul.f32 %v545, %v534
  %v552 = vmul.f32 %v548, %v535
  %553 = vst [vmem:[#allocation2 + $0xc0] sm:$0xff] %v549
  %554 = vst [vmem:[#allocation2 + $0xc8] sm:$0xff] %v550
  %555 = vst [vmem:[#allocation2 + $0xd0] sm:$0xff] %v551
  %556 = vst [vmem:[#allocation2 + $0xd8] sm:$0xff] %v552
  %vm557 = vmand %vm516, %vm320
  %vm558 = vmand %vm517, %vm321
  %vm559 = vmand %vm518, %vm322
  %vm560 = vmand %vm519, %vm323
  %vm561 = vmand %vm557, %vm328
  %vm562 = vmand %vm558, %vm329
  %vm563 = vmand %vm559, %vm330
  %vm564 = vmand %vm560, %vm331
  %v565 = vsel %vm561, 1, 0
  %v566 = vsel %vm562, 1, 0
  %v567 = vsel %vm563, 1, 0
  %v568 = vsel %vm564, 1, 0
  %v569 = vcvt.s32.f32 %v565
  %v570 = vcvt.s32.f32 %v566
  %v571 = vcvt.s32.f32 %v567
  %v572 = vcvt.s32.f32 %v568
  %573 = vrot.lane.b32.xlu0 %v251, 112
  %v574 = vpop.permute.xlu0 %573
  %575 = vrot.lane.b32.xlu0 %v252, 112
  %v576 = vpop.permute.xlu0 %575
  %577 = vrot.lane.b32.xlu0 %v253, 112
  %v578 = vpop.permute.xlu0 %577
  %579 = vrot.lane.b32.xlu0 %v254, 112
  %v580 = vpop.permute.xlu0 %579
  %vm581 = vcmp.lt.s32.totalorder %v36, 112
  %v582 = vsel %vm581, %v578, %v580
  %v583 = vsel %vm581, %v576, %v578
  %v584 = vsel %vm581, %v574, %v576
  %v585 = vsel %vm581, %v580, %v574
  %v586 = vmul.f32 %v584, %v569
  %v587 = vmul.f32 %v583, %v570
  %v588 = vmul.f32 %v582, %v571
  %v589 = vmul.f32 %v585, %v572
  %590 = vst [vmem:[#allocation2 + $0xe0] sm:$0xff] %v586
  %591 = vst [vmem:[#allocation2 + $0xe8] sm:$0xff] %v587
  %592 = vst [vmem:[#allocation2 + $0xf0] sm:$0xff] %v588
  %593 = vst [vmem:[#allocation2 + $0xf8] sm:$0xff] %v589
  %vm594 = vmand %vm516, %vm369
  %vm595 = vmand %vm517, %vm370
  %vm596 = vmand %vm518, %vm371
  %vm597 = vmand %vm519, %vm372
  %vm598 = vmand %vm594, %vm377
  %vm599 = vmand %vm595, %vm378
  %vm600 = vmand %vm596, %vm379
  %vm601 = vmand %vm597, %vm380
  %v602 = vsel %vm598, 1, 0
  %v603 = vsel %vm599, 1, 0
  %v604 = vsel %vm600, 1, 0
  %v605 = vsel %vm601, 1, 0
  %v606 = vcvt.s32.f32 %v602
  %v607 = vcvt.s32.f32 %v603
  %v608 = vcvt.s32.f32 %v604
  %v609 = vcvt.s32.f32 %v605
  %610 = vrot.lane.b32.xlu0 %v251, 111
  %v611 = vpop.permute.xlu0 %610
  %612 = vrot.lane.b32.xlu0 %v252, 111
  %v613 = vpop.permute.xlu0 %612
  %614 = vrot.lane.b32.xlu0 %v253, 111
  %v615 = vpop.permute.xlu0 %614
  %616 = vrot.lane.b32.xlu0 %v254, 111
  %v617 = vpop.permute.xlu0 %616
  %vm618 = vcmp.lt.s32.totalorder %v36, 111
  %v619 = vsel %vm618, %v615, %v617
  %v620 = vsel %vm618, %v613, %v615
  %v621 = vsel %vm618, %v611, %v613
  %v622 = vsel %vm618, %v617, %v611
  %v623 = vmul.f32 %v621, %v606
  %v624 = vmul.f32 %v620, %v607
  %v625 = vmul.f32 %v619, %v608
  %v626 = vmul.f32 %v622, %v609
  %627 = vst [vmem:[#allocation2 + $0x100] sm:$0xff] %v623
  %628 = vst [vmem:[#allocation2 + $0x108] sm:$0xff] %v624
  %629 = vst [vmem:[#allocation2 + $0x110] sm:$0xff] %v625
  %630 = vst [vmem:[#allocation2 + $0x118] sm:$0xff] %v626
  %v631 = vld [vmem:[%s2] sm:$0xff]
  %v632 = vld [vmem:[#allocation2] sm:$0xff]
  %v633 = vld [vmem:[#allocation2 + $0x8] sm:$0xff]
  %v634 = vld [vmem:[#allocation2 + $0x10] sm:$0xff]
  %v635 = vld [vmem:[#allocation2 + $0x18] sm:$0xff]
  %v636 = vld [vmem:[#allocation2 + $0x20] sm:$0xff]
  %v637 = vld [vmem:[#allocation2 + $0x28] sm:$0xff]
  %v638 = vld [vmem:[#allocation2 + $0x30] sm:$0xff]
  %v639 = vld [vmem:[#allocation2 + $0x38] sm:$0xff]
  %v640 = vld [vmem:[#allocation2 + $0x40] sm:$0xff]
  %v641 = vld [vmem:[#allocation2 + $0x48] sm:$0xff]
  %v642 = vld [vmem:[#allocation2 + $0x50] sm:$0xff]
  %v643 = vld [vmem:[#allocation2 + $0x58] sm:$0xff]
  %v644 = vld [vmem:[#allocation2 + $0x60] sm:$0xff]
  %v645 = vld [vmem:[#allocation2 + $0x68] sm:$0xff]
  %v646 = vld [vmem:[#allocation2 + $0x70] sm:$0xff]
  %v647 = vld [vmem:[#allocation2 + $0x78] sm:$0xff]
  %v648 = vld [vmem:[#allocation2 + $0x80] sm:$0xff]
  %v649 = vld [vmem:[#allocation2 + $0x88] sm:$0xff]
  %v650 = vld [vmem:[#allocation2 + $0x90] sm:$0xff]
  %v651 = vld [vmem:[#allocation2 + $0x98] sm:$0xff]
  %v652 = vld [vmem:[#allocation2 + $0xa0] sm:$0xff]
  %v653 = vld [vmem:[#allocation2 + $0xa8] sm:$0xff]
  %v654 = vld [vmem:[#allocation2 + $0xb0] sm:$0xff]
  %v655 = vld [vmem:[#allocation2 + $0xb8] sm:$0xff]
  %v656 = vld [vmem:[#allocation2 + $0xc0] sm:$0xff]
  %v657 = vld [vmem:[#allocation2 + $0xc8] sm:$0xff]
  %v658 = vld [vmem:[#allocation2 + $0xd0] sm:$0xff]
  %v659 = vld [vmem:[#allocation2 + $0xd8] sm:$0xff]
  %v660 = vld [vmem:[#allocation2 + $0xe0] sm:$0xff]
  %v661 = vld [vmem:[#allocation2 + $0xe8] sm:$0xff]
  %v662 = vld [vmem:[#allocation2 + $0xf0] sm:$0xff]
  %v663 = vld [vmem:[#allocation2 + $0xf8] sm:$0xff]
  %v664 = vld [vmem:[#allocation2 + $0x100] sm:$0xff]
  %v665 = vld [vmem:[#allocation2 + $0x108] sm:$0xff]
  %v666 = vld [vmem:[#allocation2 + $0x110] sm:$0xff]
  %v667 = vld [vmem:[#allocation2 + $0x118] sm:$0xff]
  %vm668 = vcmask 588800
  %v670 = vsel %vm668, %v631, 0
  %672 = vmatprep.subr.mxu0 %v633
  %673 = vmatpush1.msra.mxu0 %v632
  %674 = vmatprep.subr.mxu0 %v637
  %675 = vmatpush1.msra.mxu0 %v636
  %676 = vmatprep.subr.mxu0 %v641
  %677 = vmatpush1.msra.mxu0 %v640
  %678 = vmatprep.subr.mxu0 %v645
  %679 = vmatpush1.msra.mxu0 %v644
  %680 = vmatprep.subr.mxu0 %v649
  %681 = vmatpush1.msra.mxu0 %v648
  %682 = vmatprep.subr.mxu0 %v653
  %683 = vmatpush1.msra.mxu0 %v652
  %684 = vmatprep.subr.mxu0 %v657
  %685 = vmatpush1.msra.mxu0 %v656
  %686 = vmatprep.subr.mxu0 %v661
  %687 = vmatpush1.msra.mxu0 %v660
  %688 = vmatprep.subr.mxu0 %v665
  %689 = vmatpush1.msra.mxu0 %v664
  %690 = vmatprep.subr.mxu0 0.0
  %691 = vmatpush1.msra.mxu0 0.0
  %692 = vmatprep.subr.mxu0 0.0
  %693 = vmatpush1.msra.mxu0 0.0
  %694 = vmatprep.subr.mxu0 0.0
  %695 = vmatpush1.msra.mxu0 0.0
  %696 = vmatprep.subr.mxu0 0.0
  %697 = vmatpush1.msra.mxu0 0.0
  %698 = vmatprep.subr.mxu0 0.0
  %699 = vmatpush1.msra.mxu0 0.0
  %700 = vmatprep.subr.mxu0 0.0
  %701 = vmatpush1.msra.mxu0 0.0
  %702 = vmatprep.subr.mxu0 0.0
  %703 = vmatpush1.msra.mxu0 0.0
  %704 = vmatprep.subr.mxu0 0.0
  %705 = vmatpush1.msra.mxu0 0.0
  %706 = vmatprep.subr.mxu0 0.0
  %707 = vmatpush1.msra.mxu0 0.0
  %708 = vmatprep.subr.mxu0 0.0
  %709 = vmatpush1.msra.mxu0 0.0
  %710 = vmatprep.subr.mxu0 0.0
  %711 = vmatpush1.msra.mxu0 0.0
  %712 = vmatprep.subr.mxu0 0.0
  %713 = vmatpush1.msra.mxu0 0.0
  %714 = vmatprep.subr.mxu0 0.0
  %715 = vmatpush1.msra.mxu0 0.0
  %716 = vmatprep.subr.mxu0 0.0
  %717 = vmatpush1.msra.mxu0 0.0
  %718 = vmatprep.subr.mxu0 0.0
  %719 = vmatpush1.msra.mxu0 0.0
  %720 = vmatprep.subr.mxu0 0.0
  %721 = vmatpush1.msra.mxu0 0.0
  %722 = vmatprep.subr.mxu0 0.0
  %723 = vmatpush1.msra.mxu0 0.0
  %724 = vmatprep.subr.mxu0 0.0
  %725 = vmatpush1.msra.mxu0 0.0
  %726 = vmatprep.subr.mxu0 0.0
  %727 = vmatpush1.msra.mxu0 0.0
  %728 = vmatprep.subr.mxu0 0.0
  %729 = vmatpush1.msra.mxu0 0.0
  %730 = vmatprep.subr.mxu0 0.0
  %731 = vmatpush1.msra.mxu0 0.0
  %732 = vmatprep.subr.mxu0 0.0
  %733 = vmatpush1.msra.mxu0 0.0
  %734 = vmatprep.subr.mxu0 0.0
  %735 = vmatpush1.msra.mxu0 0.0
  %736 = vmatprep.mubr.f32.mxu0 0.0
  %737 = vmatmul.mubr.f32.gmra.mrb[0].mxu0 %v670
  %v738 = vpop.f32.mrb[0].mxu0
  %v739 = vadd.f32 0.0, %v738
  %v740 = vpop.f32.mrb[0].mxu0
  %v741 = vadd.f32 0.0, %v740
  %742 = vdwg.mxu0
  %743 = vmatprep.subr.mxu0 %v635
  %744 = vmatpush1.msra.mxu0 %v634
  %745 = vmatprep.subr.mxu0 %v639
  %746 = vmatpush1.msra.mxu0 %v638
  %747 = vmatprep.subr.mxu0 %v643
  %748 = vmatpush1.msra.mxu0 %v642
  %749 = vmatprep.subr.mxu0 %v647
  %750 = vmatpush1.msra.mxu0 %v646
  %751 = vmatprep.subr.mxu0 %v651
  %752 = vmatpush1.msra.mxu0 %v650
  %753 = vmatprep.subr.mxu0 %v655
  %754 = vmatpush1.msra.mxu0 %v654
  %755 = vmatprep.subr.mxu0 %v659
  %756 = vmatpush1.msra.mxu0 %v658
  %757 = vmatprep.subr.mxu0 %v663
  %758 = vmatpush1.msra.mxu0 %v662
  %759 = vmatprep.subr.mxu0 %v667
  %760 = vmatpush1.msra.mxu0 %v666
  %761 = vmatprep.subr.mxu0 0.0
  %762 = vmatpush1.msra.mxu0 0.0
  %763 = vmatprep.subr.mxu0 0.0
  %764 = vmatpush1.msra.mxu0 0.0
  %765 = vmatprep.subr.mxu0 0.0
  %766 = vmatpush1.msra.mxu0 0.0
  %767 = vmatprep.subr.mxu0 0.0
  %768 = vmatpush1.msra.mxu0 0.0
  %769 = vmatprep.subr.mxu0 0.0
  %770 = vmatpush1.msra.mxu0 0.0
  %771 = vmatprep.subr.mxu0 0.0
  %772 = vmatpush1.msra.mxu0 0.0
  %773 = vmatprep.subr.mxu0 0.0
  %774 = vmatpush1.msra.mxu0 0.0
  %775 = vmatprep.subr.mxu0 0.0
  %776 = vmatpush1.msra.mxu0 0.0
  %777 = vmatprep.subr.mxu0 0.0
  %778 = vmatpush1.msra.mxu0 0.0
  %779 = vmatprep.subr.mxu0 0.0
  %780 = vmatpush1.msra.mxu0 0.0
  %781 = vmatprep.subr.mxu0 0.0
  %782 = vmatpush1.msra.mxu0 0.0
  %783 = vmatprep.subr.mxu0 0.0
  %784 = vmatpush1.msra.mxu0 0.0
  %785 = vmatprep.subr.mxu0 0.0
  %786 = vmatpush1.msra.mxu0 0.0
  %787 = vmatprep.subr.mxu0 0.0
  %788 = vmatpush1.msra.mxu0 0.0
  %789 = vmatprep.subr.mxu0 0.0
  %790 = vmatpush1.msra.mxu0 0.0
  %791 = vmatprep.subr.mxu0 0.0
  %792 = vmatpush1.msra.mxu0 0.0
  %793 = vmatprep.subr.mxu0 0.0
  %794 = vmatpush1.msra.mxu0 0.0
  %795 = vmatprep.subr.mxu0 0.0
  %796 = vmatpush1.msra.mxu0 0.0
  %797 = vmatprep.subr.mxu0 0.0
  %798 = vmatpush1.msra.mxu0 0.0
  %799 = vmatprep.subr.mxu0 0.0
  %800 = vmatpush1.msra.mxu0 0.0
  %801 = vmatprep.subr.mxu0 0.0
  %802 = vmatpush1.msra.mxu0 0.0
  %803 = vmatprep.subr.mxu0 0.0
  %804 = vmatpush1.msra.mxu0 0.0
  %805 = vmatprep.subr.mxu0 0.0
  %806 = vmatpush1.msra.mxu0 0.0
  %807 = vmatprep.mubr.f32.mxu0 0.0
  %808 = vmatmul.mubr.f32.gmra.mrb[0].mxu0 %v670
  %v809 = vpop.f32.mrb[0].mxu0
  %v810 = vadd.f32 0.0, %v809
  %v811 = vpop.f32.mrb[0].mxu0
  %v812 = vadd.f32 0.0, %v811
  %813 = vdwg.mxu0
  %v814 = vadd.f32 %v739, %v741
  %v815 = vadd.f32 %v814, %v810
  %v816 = vadd.f32 %v815, %v812
  %817 = vadd.xlane.f32.xlu0 %v816
  %v818 = vpop.xlane.xlu0 %817
  %v819 = vmul.f32 %v739, %v739
  %v820 = vmul.f32 %v741, %v741
  %v821 = vmul.f32 %v810, %v810
  %v822 = vmul.f32 %v812, %v812
  %v823 = vadd.f32 %v819, %v820
  %v824 = vadd.f32 %v823, %v821
  %v825 = vadd.f32 %v824, %v822
  %826 = vadd.xlane.f32.xlu0 %v825
  %v827 = vpop.xlane.xlu0 %826
  %v828 = vmul.f32 %v818, 0.001953125
  %v829 = vmul.f32 %v827, 0.001953125
  %v830 = vmul.f32 %v828, %v828
  %v831 = vsub.f32 %v829, %v830
  %v832 = vmax.f32 %v831, 0.0
  %v833 = vld [vmem:[%s6] sm:$0xff]
  %v834 = vadd.f32 %v832, 1e-05
  %v835 = vrsqrt.pop %v834
  %v836 = vmul.f32 %v833, %v835
  %v837 = vld [vmem:[%s7] sm:$0xff]
  %v838 = vmul.f32 %v828, %v836
  %v839 = vsub.f32 %v837, %v838
  %841 = vset.pattern.permute.xlu0 0
  %842 = vperm.xlu0 %841, %v836
  %v843 = vpop.permute.xlu0 %842
  %v845 = vmul.f32 %v739, %v843
  %v846 = vmul.f32 %v741, %v843
  %v847 = vmul.f32 %v810, %v843
  %v848 = vmul.f32 %v812, %v843
  %850 = vset.pattern.permute.xlu0 0
  %851 = vperm.xlu0 %850, %v839
  %v852 = vpop.permute.xlu0 %851
  %v854 = vadd.f32 %v845, %v852
  %v855 = vadd.f32 %v846, %v852
  %v856 = vadd.f32 %v847, %v852
  %v857 = vadd.f32 %v848, %v852
  %v858 = vmax.f32 %v854, 0.0
  %v859 = vmax.f32 %v855, 0.0
  %v860 = vmax.f32 %v856, 0.0
  %v861 = vmax.f32 %v857, 0.0
  %v862 = vld [vmem:[%s3] sm:$0xff]
  %v863 = vld [vmem:[%s3 + $0x8] sm:$0xff]
  %v864 = vld [vmem:[%s3 + $0x10] sm:$0xff]
  %v865 = vld [vmem:[%s3 + $0x18] sm:$0xff]
  %vm866 = vcmask 64512
  %v868 = vsel %vm866, %v862, 0
  %v871 = vsel %vm866, %v863, 0
  %v874 = vsel %vm866, %v864, 0
  %v877 = vsel %vm866, %v865, 0
  %879 = vmatprep.subr.mxu0 %v859
  %880 = vmatpush1.msra.mxu0 %v858
  %881 = vmatprep.subr.mxu0 0.0
  %882 = vmatpush1.msra.mxu0 0.0
  %883 = vmatprep.subr.mxu0 0.0
  %884 = vmatpush1.msra.mxu0 0.0
  %885 = vmatprep.subr.mxu0 0.0
  %886 = vmatpush1.msra.mxu0 0.0
  %887 = vmatprep.subr.mxu0 0.0
  %888 = vmatpush1.msra.mxu0 0.0
  %889 = vmatprep.subr.mxu0 0.0
  %890 = vmatpush1.msra.mxu0 0.0
  %891 = vmatprep.subr.mxu0 0.0
  %892 = vmatpush1.msra.mxu0 0.0
  %893 = vmatprep.subr.mxu0 0.0
  %894 = vmatpush1.msra.mxu0 0.0
  %895 = vmatprep.subr.mxu0 0.0
  %896 = vmatpush1.msra.mxu0 0.0
  %897 = vmatprep.subr.mxu0 0.0
  %898 = vmatpush1.msra.mxu0 0.0
  %899 = vmatprep.subr.mxu0 0.0
  %900 = vmatpush1.msra.mxu0 0.0
  %901 = vmatprep.subr.mxu0 0.0
  %902 = vmatpush1.msra.mxu0 0.0
  %903 = vmatprep.subr.mxu0 0.0
  %904 = vmatpush1.msra.mxu0 0.0
  %905 = vmatprep.subr.mxu0 0.0
  %906 = vmatpush1.msra.mxu0 0.0
  %907 = vmatprep.subr.mxu0 0.0
  %908 = vmatpush1.msra.mxu0 0.0
  %909 = vmatprep.subr.mxu0 0.0
  %910 = vmatpush1.msra.mxu0 0.0
  %911 = vmatprep.subr.mxu0 0.0
  %912 = vmatpush1.msra.mxu0 0.0
  %913 = vmatprep.subr.mxu0 0.0
  %914 = vmatpush1.msra.mxu0 0.0
  %915 = vmatprep.subr.mxu0 0.0
  %916 = vmatpush1.msra.mxu0 0.0
  %917 = vmatprep.subr.mxu0 0.0
  %918 = vmatpush1.msra.mxu0 0.0
  %919 = vmatprep.subr.mxu0 0.0
  %920 = vmatpush1.msra.mxu0 0.0
  %921 = vmatprep.subr.mxu0 0.0
  %922 = vmatpush1.msra.mxu0 0.0
  %923 = vmatprep.subr.mxu0 0.0
  %924 = vmatpush1.msra.mxu0 0.0
  %925 = vmatprep.subr.mxu0 0.0
  %926 = vmatpush1.msra.mxu0 0.0
  %927 = vmatprep.subr.mxu0 0.0
  %928 = vmatpush1.msra.mxu0 0.0
  %929 = vmatprep.subr.mxu0 0.0
  %930 = vmatpush1.msra.mxu0 0.0
  %931 = vmatprep.subr.mxu0 0.0
  %932 = vmatpush1.msra.mxu0 0.0
  %933 = vmatprep.subr.mxu0 0.0
  %934 = vmatpush1.msra.mxu0 0.0
  %935 = vmatprep.subr.mxu0 0.0
  %936 = vmatpush1.msra.mxu0 0.0
  %937 = vmatprep.subr.mxu0 0.0
  %938 = vmatpush1.msra.mxu0 0.0
  %939 = vmatprep.subr.mxu0 0.0
  %940 = vmatpush1.msra.mxu0 0.0
  %941 = vmatprep.subr.mxu0 0.0
  %942 = vmatpush1.msra.mxu0 0.0
  %943 = vmatprep.mubr.f32.mxu0 0.0
  %944 = vmatmul.mubr.f32.gmra.mrb[0].mxu0 %v868
  %v945 = vpop.f32.mrb[0].mxu0
  %v946 = vadd.f32 0.0, %v945
  %v947 = vpop.f32.mrb[0].mxu0
  %v948 = vadd.f32 0.0, %v947
  %949 = vmatprep.mubr.f32.mxu0 0.0
  %950 = vmatmul.mubr.f32.gmra.mrb[0].mxu0 %v871
  %v951 = vpop.f32.mrb[0].mxu0
  %v952 = vadd.f32 0.0, %v951
  %v953 = vpop.f32.mrb[0].mxu0
  %v954 = vadd.f32 0.0, %v953
  %955 = vmatprep.mubr.f32.mxu0 0.0
  %956 = vmatmul.mubr.f32.gmra.mrb[0].mxu0 %v874
  %v957 = vpop.f32.mrb[0].mxu0
  %v958 = vadd.f32 0.0, %v957
  %v959 = vpop.f32.mrb[0].mxu0
  %v960 = vadd.f32 0.0, %v959
  %961 = vmatprep.mubr.f32.mxu0 0.0
  %962 = vmatmul.mubr.f32.gmra.mrb[0].mxu0 %v877
  %v963 = vpop.f32.mrb[0].mxu0
  %v964 = vadd.f32 0.0, %v963
  %v965 = vpop.f32.mrb[0].mxu0
  %v966 = vadd.f32 0.0, %v965
  %967 = vdwg.mxu0
  %968 = vmatprep.subr.mxu0 %v861
  %969 = vmatpush1.msra.mxu0 %v860
  %970 = vmatprep.subr.mxu0 0.0
  %971 = vmatpush1.msra.mxu0 0.0
  %972 = vmatprep.subr.mxu0 0.0
  %973 = vmatpush1.msra.mxu0 0.0
  %974 = vmatprep.subr.mxu0 0.0
  %975 = vmatpush1.msra.mxu0 0.0
  %976 = vmatprep.subr.mxu0 0.0
  %977 = vmatpush1.msra.mxu0 0.0
  %978 = vmatprep.subr.mxu0 0.0
  %979 = vmatpush1.msra.mxu0 0.0
  %980 = vmatprep.subr.mxu0 0.0
  %981 = vmatpush1.msra.mxu0 0.0
  %982 = vmatprep.subr.mxu0 0.0
  %983 = vmatpush1.msra.mxu0 0.0
  %984 = vmatprep.subr.mxu0 0.0
  %985 = vmatpush1.msra.mxu0 0.0
  %986 = vmatprep.subr.mxu0 0.0
  %987 = vmatpush1.msra.mxu0 0.0
  %988 = vmatprep.subr.mxu0 0.0
  %989 = vmatpush1.msra.mxu0 0.0
  %990 = vmatprep.subr.mxu0 0.0
  %991 = vmatpush1.msra.mxu0 0.0
  %992 = vmatprep.subr.mxu0 0.0
  %993 = vmatpush1.msra.mxu0 0.0
  %994 = vmatprep.subr.mxu0 0.0
  %995 = vmatpush1.msra.mxu0 0.0
  %996 = vmatprep.subr.mxu0 0.0
  %997 = vmatpush1.msra.mxu0 0.0
  %998 = vmatprep.subr.mxu0 0.0
  %999 = vmatpush1.msra.mxu0 0.0
  %1000 = vmatprep.subr.mxu0 0.0
  %1001 = vmatpush1.msra.mxu0 0.0
  %1002 = vmatprep.subr.mxu0 0.0
  %1003 = vmatpush1.msra.mxu0 0.0
  %1004 = vmatprep.subr.mxu0 0.0
  %1005 = vmatpush1.msra.mxu0 0.0
  %1006 = vmatprep.subr.mxu0 0.0
  %1007 = vmatpush1.msra.mxu0 0.0
  %1008 = vmatprep.subr.mxu0 0.0
  %1009 = vmatpush1.msra.mxu0 0.0
  %1010 = vmatprep.subr.mxu0 0.0
  %1011 = vmatpush1.msra.mxu0 0.0
  %1012 = vmatprep.subr.mxu0 0.0
  %1013 = vmatpush1.msra.mxu0 0.0
  %1014 = vmatprep.subr.mxu0 0.0
  %1015 = vmatpush1.msra.mxu0 0.0
  %1016 = vmatprep.subr.mxu0 0.0
  %1017 = vmatpush1.msra.mxu0 0.0
  %1018 = vmatprep.subr.mxu0 0.0
  %1019 = vmatpush1.msra.mxu0 0.0
  %1020 = vmatprep.subr.mxu0 0.0
  %1021 = vmatpush1.msra.mxu0 0.0
  %1022 = vmatprep.subr.mxu0 0.0
  %1023 = vmatpush1.msra.mxu0 0.0
  %1024 = vmatprep.subr.mxu0 0.0
  %1025 = vmatpush1.msra.mxu0 0.0
  %1026 = vmatprep.subr.mxu0 0.0
  %1027 = vmatpush1.msra.mxu0 0.0
  %1028 = vmatprep.subr.mxu0 0.0
  %1029 = vmatpush1.msra.mxu0 0.0
  %1030 = vmatprep.subr.mxu0 0.0
  %1031 = vmatpush1.msra.mxu0 0.0
  %1032 = vmatprep.mubr.f32.mxu0 0.0
  %1033 = vmatmul.mubr.f32.gmra.mrb[0].mxu0 %v868
  %v1034 = vpop.f32.mrb[0].mxu0
  %v1035 = vadd.f32 0.0, %v1034
  %v1036 = vpop.f32.mrb[0].mxu0
  %v1037 = vadd.f32 0.0, %v1036
  %1038 = vmatprep.mubr.f32.mxu0 0.0
  %1039 = vmatmul.mubr.f32.gmra.mrb[0].mxu0 %v871
  %v1040 = vpop.f32.mrb[0].mxu0
  %v1041 = vadd.f32 0.0, %v1040
  %v1042 = vpop.f32.mrb[0].mxu0
  %v1043 = vadd.f32 0.0, %v1042
  %1044 = vmatprep.mubr.f32.mxu0 0.0
  %1045 = vmatmul.mubr.f32.gmra.mrb[0].mxu0 %v874
  %v1046 = vpop.f32.mrb[0].mxu0
  %v1047 = vadd.f32 0.0, %v1046
  %v1048 = vpop.f32.mrb[0].mxu0
  %v1049 = vadd.f32 0.0, %v1048
  %1050 = vmatprep.mubr.f32.mxu0 0.0
  %1051 = vmatmul.mubr.f32.gmra.mrb[0].mxu0 %v877
  %v1052 = vpop.f32.mrb[0].mxu0
  %v1053 = vadd.f32 0.0, %v1052
  %v1054 = vpop.f32.mrb[0].mxu0
  %v1055 = vadd.f32 0.0, %v1054
  %1056 = vdwg.mxu0
  %v1057 = vadd.f32 %v946, %v948
  %v1058 = vadd.f32 %v1057, %v1035
  %v1059 = vadd.f32 %v1058, %v1037
  %1060 = vadd.xlane.f32.xlu0 %v1059
  %v1061 = vpop.xlane.xlu0 %1060
  %v1062 = vadd.f32 %v952, %v954
  %v1063 = vadd.f32 %v1062, %v1041
  %v1064 = vadd.f32 %v1063, %v1043
  %1065 = vadd.xlane.f32.xlu0 %v1064
  %v1066 = vpop.xlane.xlu0 %1065
  %v1067 = vadd.f32 %v958, %v960
  %v1068 = vadd.f32 %v1067, %v1047
  %v1069 = vadd.f32 %v1068, %v1049
  %1070 = vadd.xlane.f32.xlu0 %v1069
  %v1071 = vpop.xlane.xlu0 %1070
  %v1072 = vadd.f32 %v964, %v966
  %v1073 = vadd.f32 %v1072, %v1053
  %v1074 = vadd.f32 %v1073, %v1055
  %1075 = vadd.xlane.f32.xlu0 %v1074
  %v1076 = vpop.xlane.xlu0 %1075
  %v1077 = vmul.f32 %v946, %v946
  %v1078 = vmul.f32 %v948, %v948
  %v1079 = vmul.f32 %v1035, %v1035
  %v1080 = vmul.f32 %v1037, %v1037
  %v1081 = vmul.f32 %v952, %v952
  %v1082 = vmul.f32 %v954, %v954
  %v1083 = vmul.f32 %v1041, %v1041
  %v1084 = vmul.f32 %v1043, %v1043
  %v1085 = vmul.f32 %v958, %v958
  %v1086 = vmul.f32 %v960, %v960
  %v1087 = vmul.f32 %v1047, %v1047
  %v1088 = vmul.f32 %v1049, %v1049
  %v1089 = vmul.f32 %v964, %v964
  %v1090 = vmul.f32 %v966, %v966
  %v1091 = vmul.f32 %v1053, %v1053
  %v1092 = vmul.f32 %v1055, %v1055
  %v1093 = vadd.f32 %v1077, %v1078
  %v1094 = vadd.f32 %v1093, %v1079
  %v1095 = vadd.f32 %v1094, %v1080
  %1096 = vadd.xlane.f32.xlu0 %v1095
  %v1097 = vpop.xlane.xlu0 %1096
  %v1098 = vadd.f32 %v1081, %v1082
  %v1099 = vadd.f32 %v1098, %v1083
  %v1100 = vadd.f32 %v1099, %v1084
  %1101 = vadd.xlane.f32.xlu0 %v1100
  %v1102 = vpop.xlane.xlu0 %1101
  %v1103 = vadd.f32 %v1085, %v1086
  %v1104 = vadd.f32 %v1103, %v1087
  %v1105 = vadd.f32 %v1104, %v1088
  %1106 = vadd.xlane.f32.xlu0 %v1105
  %v1107 = vpop.xlane.xlu0 %1106
  %v1108 = vadd.f32 %v1089, %v1090
  %v1109 = vadd.f32 %v1108, %v1091
  %v1110 = vadd.f32 %v1109, %v1092
  %1111 = vadd.xlane.f32.xlu0 %v1110
  %v1112 = vpop.xlane.xlu0 %1111
  %v1113 = vmul.f32 %v1061, 0.001953125
  %v1114 = vmul.f32 %v1066, 0.001953125
  %v1115 = vmul.f32 %v1071, 0.001953125
  %v1116 = vmul.f32 %v1076, 0.001953125
  %v1117 = vmul.f32 %v1097, 0.001953125
  %v1118 = vmul.f32 %v1102, 0.001953125
  %v1119 = vmul.f32 %v1107, 0.001953125
  %v1120 = vmul.f32 %v1112, 0.001953125
  %v1121 = vmul.f32 %v1113, %v1113
  %v1122 = vmul.f32 %v1114, %v1114
  %v1123 = vmul.f32 %v1115, %v1115
  %v1124 = vmul.f32 %v1116, %v1116
  %v1125 = vsub.f32 %v1117, %v1121
  %v1126 = vsub.f32 %v1118, %v1122
  %v1127 = vsub.f32 %v1119, %v1123
  %v1128 = vsub.f32 %v1120, %v1124
  %v1129 = vmax.f32 %v1125, 0.0
  %v1130 = vmax.f32 %v1126, 0.0
  %v1131 = vmax.f32 %v1127, 0.0
  %v1132 = vmax.f32 %v1128, 0.0
  %v1133 = vld [vmem:[%s8] sm:$0xff]
  %v1134 = vld [vmem:[%s8 + $0x8] sm:$0xff]
  %v1135 = vld [vmem:[%s8 + $0x10] sm:$0xff]
  %v1136 = vld [vmem:[%s8 + $0x18] sm:$0xff]
  %v1137 = vadd.f32 %v1129, 1e-05
  %v1138 = vadd.f32 %v1130, 1e-05
  %v1139 = vadd.f32 %v1131, 1e-05
  %v1140 = vadd.f32 %v1132, 1e-05
  %v1141 = vrsqrt.pop %v1137
  %v1142 = vrsqrt.pop %v1138
  %v1143 = vrsqrt.pop %v1139
  %v1144 = vrsqrt.pop %v1140
  %v1145 = vmul.f32 %v1133, %v1141
  %v1146 = vmul.f32 %v1134, %v1142
  %v1147 = vmul.f32 %v1135, %v1143
  %v1148 = vmul.f32 %v1136, %v1144
  %v1149 = vld [vmem:[%s9] sm:$0xff]
  %v1150 = vld [vmem:[%s9 + $0x8] sm:$0xff]
  %v1151 = vld [vmem:[%s9 + $0x10] sm:$0xff]
  %v1152 = vld [vmem:[%s9 + $0x18] sm:$0xff]
  %v1153 = vmul.f32 %v1113, %v1145
  %v1154 = vmul.f32 %v1114, %v1146
  %v1155 = vmul.f32 %v1115, %v1147
  %v1156 = vmul.f32 %v1116, %v1148
  %v1157 = vsub.f32 %v1149, %v1153
  %v1158 = vsub.f32 %v1150, %v1154
  %v1159 = vsub.f32 %v1151, %v1155
  %v1160 = vsub.f32 %v1152, %v1156
  %1162 = vset.pattern.permute.xlu0 0
  %1163 = vperm.xlu0 %1162, %v1145
  %v1164 = vpop.permute.xlu0 %1163
  %1167 = vset.pattern.permute.xlu0 0
  %1168 = vperm.xlu0 %1167, %v1146
  %v1169 = vpop.permute.xlu0 %1168
  %1172 = vset.pattern.permute.xlu0 0
  %1173 = vperm.xlu0 %1172, %v1147
  %v1174 = vpop.permute.xlu0 %1173
  %1177 = vset.pattern.permute.xlu0 0
  %1178 = vperm.xlu0 %1177, %v1148
  %v1179 = vpop.permute.xlu0 %1178
  %v1181 = vmul.f32 %v946, %v1164
  %v1182 = vmul.f32 %v948, %v1164
  %v1183 = vmul.f32 %v1035, %v1164
  %v1184 = vmul.f32 %v1037, %v1164
  %v1185 = vmul.f32 %v952, %v1169
  %v1186 = vmul.f32 %v954, %v1169
  %v1187 = vmul.f32 %v1041, %v1169
  %v1188 = vmul.f32 %v1043, %v1169
  %v1189 = vmul.f32 %v958, %v1174
  %v1190 = vmul.f32 %v960, %v1174
  %v1191 = vmul.f32 %v1047, %v1174
  %v1192 = vmul.f32 %v1049, %v1174
  %v1193 = vmul.f32 %v964, %v1179
  %v1194 = vmul.f32 %v966, %v1179
  %v1195 = vmul.f32 %v1053, %v1179
  %v1196 = vmul.f32 %v1055, %v1179
  %1198 = vset.pattern.permute.xlu0 0
  %1199 = vperm.xlu0 %1198, %v1157
  %v1200 = vpop.permute.xlu0 %1199
  %1203 = vset.pattern.permute.xlu0 0
  %1204 = vperm.xlu0 %1203, %v1158
  %v1205 = vpop.permute.xlu0 %1204
  %1208 = vset.pattern.permute.xlu0 0
  %1209 = vperm.xlu0 %1208, %v1159
  %v1210 = vpop.permute.xlu0 %1209
  %1213 = vset.pattern.permute.xlu0 0
  %1214 = vperm.xlu0 %1213, %v1160
  %v1215 = vpop.permute.xlu0 %1214
  %v1217 = vadd.f32 %v1181, %v1200
  %v1218 = vadd.f32 %v1182, %v1200
  %v1219 = vadd.f32 %v1183, %v1200
  %v1220 = vadd.f32 %v1184, %v1200
  %v1221 = vadd.f32 %v1185, %v1205
  %v1222 = vadd.f32 %v1186, %v1205
  %v1223 = vadd.f32 %v1187, %v1205
  %v1224 = vadd.f32 %v1188, %v1205
  %v1225 = vadd.f32 %v1189, %v1210
  %v1226 = vadd.f32 %v1190, %v1210
  %v1227 = vadd.f32 %v1191, %v1210
  %v1228 = vadd.f32 %v1192, %v1210
  %v1229 = vadd.f32 %v1193, %v1215
  %v1230 = vadd.f32 %v1194, %v1215
  %v1231 = vadd.f32 %v1195, %v1215
  %v1232 = vadd.f32 %v1196, %v1215
  %1233 = vst [vmem:[%s10] sm:$0xff] %v1217
  %1234 = vst [vmem:[%s10 + $0x8] sm:$0xff] %v1218
  %1235 = vst [vmem:[%s10 + $0x10] sm:$0xff] %v1219
  %1236 = vst [vmem:[%s10 + $0x18] sm:$0xff] %v1220
  %1237 = vst [vmem:[%s10 + $0x20] sm:$0xff] %v1221
  %1238 = vst [vmem:[%s10 + $0x28] sm:$0xff] %v1222
  %1239 = vst [vmem:[%s10 + $0x30] sm:$0xff] %v1223
  %1240 = vst [vmem:[%s10 + $0x38] sm:$0xff] %v1224
  %1241 = vst [vmem:[%s10 + $0x40] sm:$0xff] %v1225
  %1242 = vst [vmem:[%s10 + $0x48] sm:$0xff] %v1226
  %1243 = vst [vmem:[%s10 + $0x50] sm:$0xff] %v1227
  %1244 = vst [vmem:[%s10 + $0x58] sm:$0xff] %v1228
  %1245 = vst [vmem:[%s10 + $0x60] sm:$0xff] %v1229
  %1246 = vst [vmem:[%s10 + $0x68] sm:$0xff] %v1230
  %1247 = vst [vmem:[%s10 + $0x70] sm:$0xff] %v1231
  %1248 = vst [vmem:[%s10 + $0x78] sm:$0xff] %v1232
  // Predicated region
  $region42: #{_lambda_.1} parent=0 // pred_check
    _
  $region43: #{_lambda_.1} parent=0 // pred_check_branch
    %1250 = sbr.rel (0) target = $region45
  $region44: #{_lambda_.1} parent=0 // pred_region
    _
  $region45: #{_lambda_.1} parent=0 // pred_fallthru
    _
  // Predicated region
  $region46: #{_lambda_.1} parent=0 // pred_check
    _
  $region47: #{_lambda_.1} parent=0 // pred_check_branch
    %1252 = sbr.rel (0) target = $region49
  $region48: #{_lambda_.1} parent=0 // pred_region
    _
  $region49: #{_lambda_.1} parent=0 // pred_fallthru
    _

</llo_original>
